<compile_context>
chip_gen: v7x
topology: tpu7x:2x2x1
jax: 0.10.0
libtpu: 0.0.40
codegen_flags: <defaults>
</compile_context>

<pallas_src>
import functools

import jax
import jax.numpy as jnp
from jax import lax
from jax.experimental import pallas as pl
from jax.experimental.pallas import tpu as pltpu


def _round_up(x, m):
    return ((x + m - 1) // m) * m


def _vmem_budgets():
    """Returns (pipeline working-set budget, scoped VMEM limit) in bytes."""
    cap = None
    try:
        cap = getattr(pltpu.get_tpu_info(), "vmem_capacity_bytes", None)
    except Exception:
        cap = None
    if not cap:
        cap = 64 * 1024 * 1024  # v7x per-TensorCore VMEM (smallest generation)
    return int(cap * 0.55), int(cap * 0.85)


def _choose_tile_pairs(num_pairs, w2, c, in_sz, out_sz, budget_bytes,
                       fixed_bytes):
    """Pick the number of image row-pairs per grid step from a VMEM budget."""
    n = 2 * c
    w2_pad = _round_up(w2, 8)
    lane_2c = _round_up(2 * c, 128)
    lane_n = _round_up(n, 128)
    per_pair = (2 * 2 * w2_pad * lane_2c * in_sz   # streamed x tile, 2 buffers
                + 2 * w2_pad * lane_n * out_sz     # output tile, 2 buffers
                + 16 * lane_2c * 4)                # ~2 live iters of f32 temps
    avail = max(budget_bytes - fixed_bytes, 8 * per_pair)
    tp = max(8, (avail // per_pair) // 8 * 8)
    tp = min(tp, _round_up(num_pairs, 8))
    if num_pairs >= 16:
        # Keep at least two row tiles so v7x's two TensorCores both get work.
        tp = min(tp, _round_up((num_pairs + 1) // 2, 8))
    return tp


def _patch_merging_kernel(x_ref, g_ref, b_ref, wt_ref, wb_ref, o_ref, *,
                          num_w2, eps):
    """Fused 2x2 merge + LayerNorm(4C) + Linear(4C -> 2C, no bias).

    x_ref : (TP, 2, W2, 2C)  TP image row-pairs in natural (hp, w2, wp*c)
                             memory order (single contiguous DMA per step).
    g_ref : (2, 2C)          LayerNorm gamma; row hp, features in (wp, c) order.
    b_ref : (2, 2C)          LayerNorm beta, same layout.
    wt_ref: (2C, N)          reduction-weight rows for the hp=0 features.
    wb_ref: (2C, N)          reduction-weight rows for the hp=1 features.
    o_ref : (TP, W2, N)
    """
    k = 2 * g_ref.shape[-1]  # 4C
    inv_k = 1.0 / float(k)

    # Resident parameters: load/cast once, outside the unrolled loop.
    gamma = g_ref[...].astype(jnp.float32)
    beta = b_ref[...].astype(jnp.float32)
    g_top, g_bot = gamma[0:1, :], gamma[1:2, :]
    b_top, b_bot = beta[0:1, :], beta[1:2, :]
    w_top = wt_ref[...]
    w_bot = wb_ref[...]

    # Static loop over the W/2 merged columns of this row-pair tile.
    for j in range(num_w2):
        # Even / odd image rows at merged column j; the 2C axis is already in
        # (wp, c) order, matching the pre-permuted gamma/beta/weight halves.
        top = x_ref[:, 0, j, :].astype(jnp.float32)   # (TP, 2C)
        bot = x_ref[:, 1, j, :].astype(jnp.float32)   # (TP, 2C)

        # LayerNorm over the full 4C features via partial sums (no padding,
        # no masking needed); exact two-pass mean/variance in f32.
        mean = (jnp.sum(top, axis=-1, keepdims=True) +
                jnp.sum(bot, axis=-1, keepdims=True)) * inv_k
        d_top = top - mean
        d_bot = bot - mean
        var = (jnp.sum(d_top * d_top, axis=-1, keepdims=True) +
               jnp.sum(d_bot * d_bot, axis=-1, keepdims=True)) * inv_k
        inv_std = lax.rsqrt(var + eps)
        y_top = d_top * inv_std * g_top + b_top
        y_bot = d_bot * inv_std * g_bot + b_bot

        # Reduction matmul on the MXU (split over the two weight-row halves),
        # f32 accumulation, single cast on the store.
        acc = (jnp.dot(y_top.astype(w_top.dtype), w_top,
                       preferred_element_type=jnp.float32) +
               jnp.dot(y_bot.astype(w_bot.dtype), w_bot,
                       preferred_element_type=jnp.float32))
        o_ref[:, j, :] = acc.astype(o_ref.dtype)


def patch_merging(x, gamma, beta, w_red, input_resolution, *, eps=1e-5,
                  stream_dtype=None):
    """PatchMerging forward.

    x:      (B, L, C)  with L == H*W
    gamma:  (4C,)      LayerNorm weight
    beta:   (4C,)      LayerNorm bias
    w_red:  (2C, 4C)   nn.Linear(4C, 2C, bias=False) weight
    stream_dtype: optional dtype (e.g. jnp.bfloat16) for the streamed
                  activations / weight; statistics and accumulation stay f32.
    returns (B, L//4, 2C)
    """
    H, W = input_resolution
    B, L, C = x.shape
    assert L == H * W, "sequence length must equal H*W"
    assert H % 2 == 0 and W % 2 == 0, "H and W must be even"

    H2, W2 = H // 2, W // 2
    P = B * H2              # image row-pairs
    M = P * W2              # merged tokens
    K = 4 * C
    N = 2 * C

    in_dtype = jnp.dtype(stream_dtype) if stream_dtype is not None else x.dtype

    # ---- zero-copy activation view: (B, H*W, C) -> (B*H/2, hp, W/2, wp*C) ----
    x4 = x.reshape(P, 2, W2, 2 * C)
    if x4.dtype != in_dtype:
        x4 = x4.astype(in_dtype)

    # ---- permute the (tiny) parameters from PyTorch's (wp, hp, c) concat
    # order to the kernel's natural (hp, wp, c) order, instead of shuffling
    # the (M, 4C) activations. ----
    gamma_hp = jnp.transpose(gamma.reshape(2, 2, C), (1, 0, 2)).reshape(2, 2 * C)
    beta_hp = jnp.transpose(beta.reshape(2, 2, C), (1, 0, 2)).reshape(2, 2 * C)
    wt4 = w_red.T.reshape(2, 2, C, N)          # [wp, hp, c, n]
    w_top = wt4[:, 0].reshape(2 * C, N).astype(in_dtype)   # rows for hp=0
    w_bot = wt4[:, 1].reshape(2 * C, N).astype(in_dtype)   # rows for hp=1

    # ---- tiling / VMEM budgeting ----
    in_sz = jnp.dtype(in_dtype).itemsize
    out_sz = jnp.dtype(x.dtype).itemsize
    budget, vmem_limit = _vmem_budgets()
    fixed = 2 * (K * N * in_sz + 4 * (2 * C) * 4)   # double-buffered params
    tp = _choose_tile_pairs(P, W2, C, in_sz, out_sz, budget, fixed)
    grid = (pl.cdiv(P, tp),)

    cost = pl.CostEstimate(
        flops=2 * M * K * N + 8 * M * K,
        transcendentals=M,
        bytes_accessed=M * K * in_sz + M * N * out_sz + (K * N + 2 * K) * in_sz,
    )

    kernel = functools.partial(_patch_merging_kernel, num_w2=W2, eps=eps)

    out = pl.pallas_call(
        kernel,
        out_shape=jax.ShapeDtypeStruct((P, W2, N), x.dtype),
        grid_spec=pltpu.PrefetchScalarGridSpec(
            num_scalar_prefetch=0,
            grid=grid,
            in_specs=[
                pl.BlockSpec((tp, 2, W2, 2 * C), lambda i: (i, 0, 0, 0)),  # x
                pl.BlockSpec((2, 2 * C), lambda i: (0, 0)),      # gamma (res.)
                pl.BlockSpec((2, 2 * C), lambda i: (0, 0)),      # beta  (res.)
                pl.BlockSpec((2 * C, N), lambda i: (0, 0)),      # W half hp=0
                pl.BlockSpec((2 * C, N), lambda i: (0, 0)),      # W half hp=1
            ],
            out_specs=pl.BlockSpec((tp, W2, N), lambda i: (i, 0, 0)),
        ),
        compiler_params=pltpu.CompilerParams(
            dimension_semantics=("parallel",),
            vmem_limit_bytes=vmem_limit),
        cost_estimate=cost,
    )(x4, gamma_hp, beta_hp, w_top, w_bot)

    # (B*H/2, W/2, 2C) -> (B, L/4, 2C): contiguous, zero-copy reshape.
    return out.reshape(B, H2 * W2, N)


if __name__ == "__main__":
    # Small shapes consistent with the module: input_resolution=(8,8), dim=32.
    B = 2
    H, W = 8, 8
    C = 32
    L = H * W

    key = jax.random.PRNGKey(0)
    kx, kg, kb, kw = jax.random.split(key, 4)
    x = jax.random.normal(kx, (B, L, C), dtype=jnp.float32)
    gamma = 1.0 + 0.1 * jax.random.normal(kg, (4 * C,), dtype=jnp.float32)
    beta = 0.1 * jax.random.normal(kb, (4 * C,), dtype=jnp.float32)
    w_red = 0.05 * jax.random.normal(kw, (2 * C, 4 * C), dtype=jnp.float32)

    out = patch_merging(x, gamma, beta, w_red, (H, W))
    out = jax.block_until_ready(out)

    # ---- pure-JAX reference, literal transcription of the PyTorch forward ----
    eps = 1e-5
    xv = x.reshape(B, H, W, C)
    x0 = xv[:, 0::2, 0::2, :]
    x1 = xv[:, 1::2, 0::2, :]
    x2 = xv[:, 0::2, 1::2, :]
    x3 = xv[:, 1::2, 1::2, :]
    xc = jnp.concatenate([x0, x1, x2, x3], -1).reshape(B, -1, 4 * C)
    mean = xc.mean(-1, keepdims=True)
    var = ((xc - mean) ** 2).mean(-1, keepdims=True)
    xn = (xc - mean) / jnp.sqrt(var + eps) * gamma + beta
    ref = xn @ w_red.T

    assert out.shape == (B, L // 4, 2 * C)
    max_err = float(jnp.max(jnp.abs(out - ref)))
    assert jnp.allclose(out, ref, atol=1e-4, rtol=1e-4), max_err

    print("KERNEL_OK")
</pallas_src>

<mosaic_0001>
module attributes {stable_mosaic.version = 11 : i64} {
  func.func @_patch_merging_kernel(%arg0: i32, %arg1: memref<8x2x4x64xf32, #tpu.memory_space<vmem>>, %arg2: memref<2x64xf32, #tpu.memory_space<vmem>>, %arg3: memref<2x64xf32, #tpu.memory_space<vmem>>, %arg4: memref<64x64xf32, #tpu.memory_space<vmem>>, %arg5: memref<64x64xf32, #tpu.memory_space<vmem>>, %arg6: memref<8x4x64xf32, #tpu.memory_space<vmem>>) attributes {dimension_semantics = [#tpu.dimension_semantics<parallel>], iteration_bounds = array<i64: 1>, scalar_prefetch = 0 : i64, scratch_operands = 0 : i64, tpu.core_type = #tpu.core_type<tc>, window_params = [{transform_indices = @transform_0, window_bounds = array<i64: 8, 2, 4, 64>}, {pipeline_mode = #tpu.pipeline_mode<synchronous>, transform_indices = @transform_1, window_bounds = array<i64: 2, 64>}, {pipeline_mode = #tpu.pipeline_mode<synchronous>, transform_indices = @transform_2, window_bounds = array<i64: 2, 64>}, {pipeline_mode = #tpu.pipeline_mode<synchronous>, transform_indices = @transform_3, window_bounds = array<i64: 64, 64>}, {pipeline_mode = #tpu.pipeline_mode<synchronous>, transform_indices = @transform_4, window_bounds = array<i64: 64, 64>}, {transform_indices = @transform_5, window_bounds = array<i64: 8, 4, 64>}]} {
    %c0 = arith.constant 0 : index
    %c0_0 = arith.constant 0 : index
    %0 = vector.load %arg2[%c0, %c0_0] : memref<2x64xf32, #tpu.memory_space<vmem>>, vector<2x64xf32>
    %c0_1 = arith.constant 0 : index
    %c0_2 = arith.constant 0 : index
    %1 = vector.load %arg3[%c0_1, %c0_2] : memref<2x64xf32, #tpu.memory_space<vmem>>, vector<2x64xf32>
    %2 = vector.extract_strided_slice %0 {offsets = [0, 0], sizes = [1, 64], strides = [1, 1]} : vector<2x64xf32> to vector<1x64xf32>
    %3 = vector.extract_strided_slice %0 {offsets = [1, 0], sizes = [1, 64], strides = [1, 1]} : vector<2x64xf32> to vector<1x64xf32>
    %4 = vector.extract_strided_slice %1 {offsets = [0, 0], sizes = [1, 64], strides = [1, 1]} : vector<2x64xf32> to vector<1x64xf32>
    %5 = vector.extract_strided_slice %1 {offsets = [1, 0], sizes = [1, 64], strides = [1, 1]} : vector<2x64xf32> to vector<1x64xf32>
    %c0_3 = arith.constant 0 : index
    %c0_4 = arith.constant 0 : index
    %6 = vector.load %arg4[%c0_3, %c0_4] : memref<64x64xf32, #tpu.memory_space<vmem>>, vector<64x64xf32>
    %c0_5 = arith.constant 0 : index
    %c0_6 = arith.constant 0 : index
    %7 = vector.load %arg5[%c0_5, %c0_6] : memref<64x64xf32, #tpu.memory_space<vmem>>, vector<64x64xf32>
    %c0_7 = arith.constant 0 : index
    %c0_8 = arith.constant 0 : index
    %c0_9 = arith.constant 0 : index
    %c0_10 = arith.constant 0 : index
    %8 = vector.load %arg1[%c0_7, %c0_8, %c0_9, %c0_10] : memref<8x2x4x64xf32, #tpu.memory_space<vmem>>, vector<8x1x1x64xf32>
    %9 = vector.shape_cast %8 : vector<8x1x1x64xf32> to vector<8x64xf32>
    %c0_11 = arith.constant 0 : index
    %c1 = arith.constant 1 : index
    %c0_12 = arith.constant 0 : index
    %c0_13 = arith.constant 0 : index
    %10 = vector.load %arg1[%c0_11, %c1, %c0_12, %c0_13] : memref<8x2x4x64xf32, #tpu.memory_space<vmem>>, vector<8x1x1x64xf32>
    %11 = vector.shape_cast %10 : vector<8x1x1x64xf32> to vector<8x64xf32>
    %cst = arith.constant dense<0.000000e+00> : vector<8xf32>
    %12 = vector.multi_reduction <add>, %9, %cst [1] : vector<8x64xf32> to vector<8xf32>
    %13 = vector.shape_cast %12 : vector<8xf32> to vector<8x1xf32>
    %cst_14 = arith.constant dense<0.000000e+00> : vector<8xf32>
    %14 = vector.multi_reduction <add>, %11, %cst_14 [1] : vector<8x64xf32> to vector<8xf32>
    %15 = vector.shape_cast %14 : vector<8xf32> to vector<8x1xf32>
    %16 = arith.addf %13, %15 : vector<8x1xf32>
    %cst_15 = arith.constant 7.812500e-03 : f32
    %17 = vector.broadcast %cst_15 : f32 to vector<8x1xf32>
    %18 = arith.mulf %16, %17 : vector<8x1xf32>
    %19 = vector.broadcast %18 : vector<8x1xf32> to vector<8x64xf32>
    %20 = arith.subf %9, %19 : vector<8x64xf32>
    %21 = vector.broadcast %18 : vector<8x1xf32> to vector<8x64xf32>
    %22 = arith.subf %11, %21 : vector<8x64xf32>
    %23 = arith.mulf %20, %20 : vector<8x64xf32>
    %cst_16 = arith.constant dense<0.000000e+00> : vector<8xf32>
    %24 = vector.multi_reduction <add>, %23, %cst_16 [1] : vector<8x64xf32> to vector<8xf32>
    %25 = vector.shape_cast %24 : vector<8xf32> to vector<8x1xf32>
    %26 = arith.mulf %22, %22 : vector<8x64xf32>
    %cst_17 = arith.constant dense<0.000000e+00> : vector<8xf32>
    %27 = vector.multi_reduction <add>, %26, %cst_17 [1] : vector<8x64xf32> to vector<8xf32>
    %28 = vector.shape_cast %27 : vector<8xf32> to vector<8x1xf32>
    %29 = arith.addf %25, %28 : vector<8x1xf32>
    %cst_18 = arith.constant 7.812500e-03 : f32
    %30 = vector.broadcast %cst_18 : f32 to vector<8x1xf32>
    %31 = arith.mulf %29, %30 : vector<8x1xf32>
    %cst_19 = arith.constant 9.99999974E-6 : f32
    %32 = vector.broadcast %cst_19 : f32 to vector<8x1xf32>
    %33 = arith.addf %31, %32 : vector<8x1xf32>
    %34 = math.rsqrt %33 : vector<8x1xf32>
    %35 = vector.broadcast %34 : vector<8x1xf32> to vector<8x64xf32>
    %36 = arith.mulf %20, %35 : vector<8x64xf32>
    %37 = vector.broadcast %2 : vector<1x64xf32> to vector<8x64xf32>
    %38 = arith.mulf %36, %37 : vector<8x64xf32>
    %39 = vector.broadcast %4 : vector<1x64xf32> to vector<8x64xf32>
    %40 = arith.addf %38, %39 : vector<8x64xf32>
    %41 = vector.broadcast %34 : vector<8x1xf32> to vector<8x64xf32>
    %42 = arith.mulf %22, %41 : vector<8x64xf32>
    %43 = vector.broadcast %3 : vector<1x64xf32> to vector<8x64xf32>
    %44 = arith.mulf %42, %43 : vector<8x64xf32>
    %45 = vector.broadcast %5 : vector<1x64xf32> to vector<8x64xf32>
    %46 = arith.addf %44, %45 : vector<8x64xf32>
    %cst_20 = arith.constant dense<0.000000e+00> : vector<8x64xf32>
    %47 = tpu.matmul %40, %6, %cst_20 {dimension_numbers = #tpu.dot_dimension_numbers<[1], [0], [0], [1], [0, 0, 1, 1], [], []>} : vector<8x64xf32>, vector<64x64xf32>, vector<8x64xf32> -> vector<8x64xf32>
    %cst_21 = arith.constant dense<0.000000e+00> : vector<8x64xf32>
    %48 = tpu.matmul %46, %7, %cst_21 {dimension_numbers = #tpu.dot_dimension_numbers<[1], [0], [0], [1], [0, 0, 1, 1], [], []>} : vector<8x64xf32>, vector<64x64xf32>, vector<8x64xf32> -> vector<8x64xf32>
    %49 = arith.addf %47, %48 : vector<8x64xf32>
    %c0_22 = arith.constant 0 : index
    %c0_23 = arith.constant 0 : index
    %c0_24 = arith.constant 0 : index
    %50 = vector.load %arg6[%c0_22, %c0_23, %c0_24] : memref<8x4x64xf32, #tpu.memory_space<vmem>>, vector<8x1x64xf32>
    %51 = vector.shape_cast %50 : vector<8x1x64xf32> to vector<8x64xf32>
    %52 = vector.shape_cast %49 : vector<8x64xf32> to vector<8x1x64xf32>
    tpu.vector_store %arg6[%c0_22, %c0_23, %c0_24], %52 {strides = array<i32>} : memref<8x4x64xf32, #tpu.memory_space<vmem>>, vector<8x1x64xf32>,
    %c0_25 = arith.constant 0 : index
    %c0_26 = arith.constant 0 : index
    %c1_27 = arith.constant 1 : index
    %c0_28 = arith.constant 0 : index
    %53 = vector.load %arg1[%c0_25, %c0_26, %c1_27, %c0_28] : memref<8x2x4x64xf32, #tpu.memory_space<vmem>>, vector<8x1x1x64xf32>
    %54 = vector.shape_cast %53 : vector<8x1x1x64xf32> to vector<8x64xf32>
    %c0_29 = arith.constant 0 : index
    %c1_30 = arith.constant 1 : index
    %c1_31 = arith.constant 1 : index
    %c0_32 = arith.constant 0 : index
    %55 = vector.load %arg1[%c0_29, %c1_30, %c1_31, %c0_32] : memref<8x2x4x64xf32, #tpu.memory_space<vmem>>, vector<8x1x1x64xf32>
    %56 = vector.shape_cast %55 : vector<8x1x1x64xf32> to vector<8x64xf32>
    %cst_33 = arith.constant dense<0.000000e+00> : vector<8xf32>
    %57 = vector.multi_reduction <add>, %54, %cst_33 [1] : vector<8x64xf32> to vector<8xf32>
    %58 = vector.shape_cast %57 : vector<8xf32> to vector<8x1xf32>
    %cst_34 = arith.constant dense<0.000000e+00> : vector<8xf32>
    %59 = vector.multi_reduction <add>, %56, %cst_34 [1] : vector<8x64xf32> to vector<8xf32>
    %60 = vector.shape_cast %59 : vector<8xf32> to vector<8x1xf32>
    %61 = arith.addf %58, %60 : vector<8x1xf32>
    %cst_35 = arith.constant 7.812500e-03 : f32
    %62 = vector.broadcast %cst_35 : f32 to vector<8x1xf32>
    %63 = arith.mulf %61, %62 : vector<8x1xf32>
    %64 = vector.broadcast %63 : vector<8x1xf32> to vector<8x64xf32>
    %65 = arith.subf %54, %64 : vector<8x64xf32>
    %66 = vector.broadcast %63 : vector<8x1xf32> to vector<8x64xf32>
    %67 = arith.subf %56, %66 : vector<8x64xf32>
    %68 = arith.mulf %65, %65 : vector<8x64xf32>
    %cst_36 = arith.constant dense<0.000000e+00> : vector<8xf32>
    %69 = vector.multi_reduction <add>, %68, %cst_36 [1] : vector<8x64xf32> to vector<8xf32>
    %70 = vector.shape_cast %69 : vector<8xf32> to vector<8x1xf32>
    %71 = arith.mulf %67, %67 : vector<8x64xf32>
    %cst_37 = arith.constant dense<0.000000e+00> : vector<8xf32>
    %72 = vector.multi_reduction <add>, %71, %cst_37 [1] : vector<8x64xf32> to vector<8xf32>
    %73 = vector.shape_cast %72 : vector<8xf32> to vector<8x1xf32>
    %74 = arith.addf %70, %73 : vector<8x1xf32>
    %cst_38 = arith.constant 7.812500e-03 : f32
    %75 = vector.broadcast %cst_38 : f32 to vector<8x1xf32>
    %76 = arith.mulf %74, %75 : vector<8x1xf32>
    %cst_39 = arith.constant 9.99999974E-6 : f32
    %77 = vector.broadcast %cst_39 : f32 to vector<8x1xf32>
    %78 = arith.addf %76, %77 : vector<8x1xf32>
    %79 = math.rsqrt %78 : vector<8x1xf32>
    %80 = vector.broadcast %79 : vector<8x1xf32> to vector<8x64xf32>
    %81 = arith.mulf %65, %80 : vector<8x64xf32>
    %82 = vector.broadcast %2 : vector<1x64xf32> to vector<8x64xf32>
    %83 = arith.mulf %81, %82 : vector<8x64xf32>
    %84 = vector.broadcast %4 : vector<1x64xf32> to vector<8x64xf32>
    %85 = arith.addf %83, %84 : vector<8x64xf32>
    %86 = vector.broadcast %79 : vector<8x1xf32> to vector<8x64xf32>
    %87 = arith.mulf %67, %86 : vector<8x64xf32>
    %88 = vector.broadcast %3 : vector<1x64xf32> to vector<8x64xf32>
    %89 = arith.mulf %87, %88 : vector<8x64xf32>
    %90 = vector.broadcast %5 : vector<1x64xf32> to vector<8x64xf32>
    %91 = arith.addf %89, %90 : vector<8x64xf32>
    %cst_40 = arith.constant dense<0.000000e+00> : vector<8x64xf32>
    %92 = tpu.matmul %85, %6, %cst_40 {dimension_numbers = #tpu.dot_dimension_numbers<[1], [0], [0], [1], [0, 0, 1, 1], [], []>} : vector<8x64xf32>, vector<64x64xf32>, vector<8x64xf32> -> vector<8x64xf32>
    %cst_41 = arith.constant dense<0.000000e+00> : vector<8x64xf32>
    %93 = tpu.matmul %91, %7, %cst_41 {dimension_numbers = #tpu.dot_dimension_numbers<[1], [0], [0], [1], [0, 0, 1, 1], [], []>} : vector<8x64xf32>, vector<64x64xf32>, vector<8x64xf32> -> vector<8x64xf32>
    %94 = arith.addf %92, %93 : vector<8x64xf32>
    %c0_42 = arith.constant 0 : index
    %c1_43 = arith.constant 1 : index
    %c0_44 = arith.constant 0 : index
    %95 = vector.load %arg6[%c0_42, %c1_43, %c0_44] : memref<8x4x64xf32, #tpu.memory_space<vmem>>, vector<8x1x64xf32>
    %96 = vector.shape_cast %95 : vector<8x1x64xf32> to vector<8x64xf32>
    %97 = vector.shape_cast %94 : vector<8x64xf32> to vector<8x1x64xf32>
    tpu.vector_store %arg6[%c0_42, %c1_43, %c0_44], %97 {strides = array<i32>} : memref<8x4x64xf32, #tpu.memory_space<vmem>>, vector<8x1x64xf32>,
    %c0_45 = arith.constant 0 : index
    %c0_46 = arith.constant 0 : index
    %c2 = arith.constant 2 : index
    %c0_47 = arith.constant 0 : index
    %98 = vector.load %arg1[%c0_45, %c0_46, %c2, %c0_47] : memref<8x2x4x64xf32, #tpu.memory_space<vmem>>, vector<8x1x1x64xf32>
    %99 = vector.shape_cast %98 : vector<8x1x1x64xf32> to vector<8x64xf32>
    %c0_48 = arith.constant 0 : index
    %c1_49 = arith.constant 1 : index
    %c2_50 = arith.constant 2 : index
    %c0_51 = arith.constant 0 : index
    %100 = vector.load %arg1[%c0_48, %c1_49, %c2_50, %c0_51] : memref<8x2x4x64xf32, #tpu.memory_space<vmem>>, vector<8x1x1x64xf32>
    %101 = vector.shape_cast %100 : vector<8x1x1x64xf32> to vector<8x64xf32>
    %cst_52 = arith.constant dense<0.000000e+00> : vector<8xf32>
    %102 = vector.multi_reduction <add>, %99, %cst_52 [1] : vector<8x64xf32> to vector<8xf32>
    %103 = vector.shape_cast %102 : vector<8xf32> to vector<8x1xf32>
    %cst_53 = arith.constant dense<0.000000e+00> : vector<8xf32>
    %104 = vector.multi_reduction <add>, %101, %cst_53 [1] : vector<8x64xf32> to vector<8xf32>
    %105 = vector.shape_cast %104 : vector<8xf32> to vector<8x1xf32>
    %106 = arith.addf %103, %105 : vector<8x1xf32>
    %cst_54 = arith.constant 7.812500e-03 : f32
    %107 = vector.broadcast %cst_54 : f32 to vector<8x1xf32>
    %108 = arith.mulf %106, %107 : vector<8x1xf32>
    %109 = vector.broadcast %108 : vector<8x1xf32> to vector<8x64xf32>
    %110 = arith.subf %99, %109 : vector<8x64xf32>
    %111 = vector.broadcast %108 : vector<8x1xf32> to vector<8x64xf32>
    %112 = arith.subf %101, %111 : vector<8x64xf32>
    %113 = arith.mulf %110, %110 : vector<8x64xf32>
    %cst_55 = arith.constant dense<0.000000e+00> : vector<8xf32>
    %114 = vector.multi_reduction <add>, %113, %cst_55 [1] : vector<8x64xf32> to vector<8xf32>
    %115 = vector.shape_cast %114 : vector<8xf32> to vector<8x1xf32>
    %116 = arith.mulf %112, %112 : vector<8x64xf32>
    %cst_56 = arith.constant dense<0.000000e+00> : vector<8xf32>
    %117 = vector.multi_reduction <add>, %116, %cst_56 [1] : vector<8x64xf32> to vector<8xf32>
    %118 = vector.shape_cast %117 : vector<8xf32> to vector<8x1xf32>
    %119 = arith.addf %115, %118 : vector<8x1xf32>
    %cst_57 = arith.constant 7.812500e-03 : f32
    %120 = vector.broadcast %cst_57 : f32 to vector<8x1xf32>
    %121 = arith.mulf %119, %120 : vector<8x1xf32>
    %cst_58 = arith.constant 9.99999974E-6 : f32
    %122 = vector.broadcast %cst_58 : f32 to vector<8x1xf32>
    %123 = arith.addf %121, %122 : vector<8x1xf32>
    %124 = math.rsqrt %123 : vector<8x1xf32>
    %125 = vector.broadcast %124 : vector<8x1xf32> to vector<8x64xf32>
    %126 = arith.mulf %110, %125 : vector<8x64xf32>
    %127 = vector.broadcast %2 : vector<1x64xf32> to vector<8x64xf32>
    %128 = arith.mulf %126, %127 : vector<8x64xf32>
    %129 = vector.broadcast %4 : vector<1x64xf32> to vector<8x64xf32>
    %130 = arith.addf %128, %129 : vector<8x64xf32>
    %131 = vector.broadcast %124 : vector<8x1xf32> to vector<8x64xf32>
    %132 = arith.mulf %112, %131 : vector<8x64xf32>
    %133 = vector.broadcast %3 : vector<1x64xf32> to vector<8x64xf32>
    %134 = arith.mulf %132, %133 : vector<8x64xf32>
    %135 = vector.broadcast %5 : vector<1x64xf32> to vector<8x64xf32>
    %136 = arith.addf %134, %135 : vector<8x64xf32>
    %cst_59 = arith.constant dense<0.000000e+00> : vector<8x64xf32>
    %137 = tpu.matmul %130, %6, %cst_59 {dimension_numbers = #tpu.dot_dimension_numbers<[1], [0], [0], [1], [0, 0, 1, 1], [], []>} : vector<8x64xf32>, vector<64x64xf32>, vector<8x64xf32> -> vector<8x64xf32>
    %cst_60 = arith.constant dense<0.000000e+00> : vector<8x64xf32>
    %138 = tpu.matmul %136, %7, %cst_60 {dimension_numbers = #tpu.dot_dimension_numbers<[1], [0], [0], [1], [0, 0, 1, 1], [], []>} : vector<8x64xf32>, vector<64x64xf32>, vector<8x64xf32> -> vector<8x64xf32>
    %139 = arith.addf %137, %138 : vector<8x64xf32>
    %c0_61 = arith.constant 0 : index
    %c2_62 = arith.constant 2 : index
    %c0_63 = arith.constant 0 : index
    %140 = vector.load %arg6[%c0_61, %c2_62, %c0_63] : memref<8x4x64xf32, #tpu.memory_space<vmem>>, vector<8x1x64xf32>
    %141 = vector.shape_cast %140 : vector<8x1x64xf32> to vector<8x64xf32>
    %142 = vector.shape_cast %139 : vector<8x64xf32> to vector<8x1x64xf32>
    tpu.vector_store %arg6[%c0_61, %c2_62, %c0_63], %142 {strides = array<i32>} : memref<8x4x64xf32, #tpu.memory_space<vmem>>, vector<8x1x64xf32>,
    %c0_64 = arith.constant 0 : index
    %c0_65 = arith.constant 0 : index
    %c3 = arith.constant 3 : index
    %c0_66 = arith.constant 0 : index
    %143 = vector.load %arg1[%c0_64, %c0_65, %c3, %c0_66] : memref<8x2x4x64xf32, #tpu.memory_space<vmem>>, vector<8x1x1x64xf32>
    %144 = vector.shape_cast %143 : vector<8x1x1x64xf32> to vector<8x64xf32>
    %c0_67 = arith.constant 0 : index
    %c1_68 = arith.constant 1 : index
    %c3_69 = arith.constant 3 : index
    %c0_70 = arith.constant 0 : index
    %145 = vector.load %arg1[%c0_67, %c1_68, %c3_69, %c0_70] : memref<8x2x4x64xf32, #tpu.memory_space<vmem>>, vector<8x1x1x64xf32>
    %146 = vector.shape_cast %145 : vector<8x1x1x64xf32> to vector<8x64xf32>
    %cst_71 = arith.constant dense<0.000000e+00> : vector<8xf32>
    %147 = vector.multi_reduction <add>, %144, %cst_71 [1] : vector<8x64xf32> to vector<8xf32>
    %148 = vector.shape_cast %147 : vector<8xf32> to vector<8x1xf32>
    %cst_72 = arith.constant dense<0.000000e+00> : vector<8xf32>
    %149 = vector.multi_reduction <add>, %146, %cst_72 [1] : vector<8x64xf32> to vector<8xf32>
    %150 = vector.shape_cast %149 : vector<8xf32> to vector<8x1xf32>
    %151 = arith.addf %148, %150 : vector<8x1xf32>
    %cst_73 = arith.constant 7.812500e-03 : f32
    %152 = vector.broadcast %cst_73 : f32 to vector<8x1xf32>
    %153 = arith.mulf %151, %152 : vector<8x1xf32>
    %154 = vector.broadcast %153 : vector<8x1xf32> to vector<8x64xf32>
    %155 = arith.subf %144, %154 : vector<8x64xf32>
    %156 = vector.broadcast %153 : vector<8x1xf32> to vector<8x64xf32>
    %157 = arith.subf %146, %156 : vector<8x64xf32>
    %158 = arith.mulf %155, %155 : vector<8x64xf32>
    %cst_74 = arith.constant dense<0.000000e+00> : vector<8xf32>
    %159 = vector.multi_reduction <add>, %158, %cst_74 [1] : vector<8x64xf32> to vector<8xf32>
    %160 = vector.shape_cast %159 : vector<8xf32> to vector<8x1xf32>
    %161 = arith.mulf %157, %157 : vector<8x64xf32>
    %cst_75 = arith.constant dense<0.000000e+00> : vector<8xf32>
    %162 = vector.multi_reduction <add>, %161, %cst_75 [1] : vector<8x64xf32> to vector<8xf32>
    %163 = vector.shape_cast %162 : vector<8xf32> to vector<8x1xf32>
    %164 = arith.addf %160, %163 : vector<8x1xf32>
    %cst_76 = arith.constant 7.812500e-03 : f32
    %165 = vector.broadcast %cst_76 : f32 to vector<8x1xf32>
    %166 = arith.mulf %164, %165 : vector<8x1xf32>
    %cst_77 = arith.constant 9.99999974E-6 : f32
    %167 = vector.broadcast %cst_77 : f32 to vector<8x1xf32>
    %168 = arith.addf %166, %167 : vector<8x1xf32>
    %169 = math.rsqrt %168 : vector<8x1xf32>
    %170 = vector.broadcast %169 : vector<8x1xf32> to vector<8x64xf32>
    %171 = arith.mulf %155, %170 : vector<8x64xf32>
    %172 = vector.broadcast %2 : vector<1x64xf32> to vector<8x64xf32>
    %173 = arith.mulf %171, %172 : vector<8x64xf32>
    %174 = vector.broadcast %4 : vector<1x64xf32> to vector<8x64xf32>
    %175 = arith.addf %173, %174 : vector<8x64xf32>
    %176 = vector.broadcast %169 : vector<8x1xf32> to vector<8x64xf32>
    %177 = arith.mulf %157, %176 : vector<8x64xf32>
    %178 = vector.broadcast %3 : vector<1x64xf32> to vector<8x64xf32>
    %179 = arith.mulf %177, %178 : vector<8x64xf32>
    %180 = vector.broadcast %5 : vector<1x64xf32> to vector<8x64xf32>
    %181 = arith.addf %179, %180 : vector<8x64xf32>
    %cst_78 = arith.constant dense<0.000000e+00> : vector<8x64xf32>
    %182 = tpu.matmul %175, %6, %cst_78 {dimension_numbers = #tpu.dot_dimension_numbers<[1], [0], [0], [1], [0, 0, 1, 1], [], []>} : vector<8x64xf32>, vector<64x64xf32>, vector<8x64xf32> -> vector<8x64xf32>
    %cst_79 = arith.constant dense<0.000000e+00> : vector<8x64xf32>
    %183 = tpu.matmul %181, %7, %cst_79 {dimension_numbers = #tpu.dot_dimension_numbers<[1], [0], [0], [1], [0, 0, 1, 1], [], []>} : vector<8x64xf32>, vector<64x64xf32>, vector<8x64xf32> -> vector<8x64xf32>
    %184 = arith.addf %182, %183 : vector<8x64xf32>
    %c0_80 = arith.constant 0 : index
    %c3_81 = arith.constant 3 : index
    %c0_82 = arith.constant 0 : index
    %185 = vector.load %arg6[%c0_80, %c3_81, %c0_82] : memref<8x4x64xf32, #tpu.memory_space<vmem>>, vector<8x1x64xf32>
    %186 = vector.shape_cast %185 : vector<8x1x64xf32> to vector<8x64xf32>
    %187 = vector.shape_cast %184 : vector<8x64xf32> to vector<8x1x64xf32>
    tpu.vector_store %arg6[%c0_80, %c3_81, %c0_82], %187 {strides = array<i32>} : memref<8x4x64xf32, #tpu.memory_space<vmem>>, vector<8x1x64xf32>,
    return
  }
  func.func @transform_0(%arg0: i32) -> (i32, i32, i32, i32) {
    %c0_i32 = arith.constant 0 : i32
    %c0_i32_0 = arith.constant 0 : i32
    %c0_i32_1 = arith.constant 0 : i32
    %c0_i32_2 = arith.constant 0 : i32
    return %arg0, %c0_i32, %c0_i32_0, %c0_i32_1 : i32, i32, i32, i32
  }
  func.func @transform_1(%arg0: i32) -> (i32, i32) {
    %c0_i32 = arith.constant 0 : i32
    %c0_i32_0 = arith.constant 0 : i32
    %c0_i32_1 = arith.constant 0 : i32
    return %c0_i32, %c0_i32_0 : i32, i32
  }
  func.func @transform_2(%arg0: i32) -> (i32, i32) {
    %c0_i32 = arith.constant 0 : i32
    %c0_i32_0 = arith.constant 0 : i32
    %c0_i32_1 = arith.constant 0 : i32
    return %c0_i32, %c0_i32_0 : i32, i32
  }
  func.func @transform_3(%arg0: i32) -> (i32, i32) {
    %c0_i32 = arith.constant 0 : i32
    %c0_i32_0 = arith.constant 0 : i32
    %c0_i32_1 = arith.constant 0 : i32
    return %c0_i32, %c0_i32_0 : i32, i32
  }
  func.func @transform_4(%arg0: i32) -> (i32, i32) {
    %c0_i32 = arith.constant 0 : i32
    %c0_i32_0 = arith.constant 0 : i32
    %c0_i32_1 = arith.constant 0 : i32
    return %c0_i32, %c0_i32_0 : i32, i32
  }
  func.func @transform_5(%arg0: i32) -> (i32, i32, i32) {
    %c0_i32 = arith.constant 0 : i32
    %c0_i32_0 = arith.constant 0 : i32
    %c0_i32_1 = arith.constant 0 : i32
    return %arg0, %c0_i32, %c0_i32_0 : i32, i32, i32
  }
}

</mosaic_0001>

<llo_original>
// kernel: tpu_custom_call.1
$region0: #{tpu_custom_call.1}
  #allocation0 [shape = 'u32[]', space=smem, size = 0x4, offset = 0x4, fixed_abs, tag = 'smem constant byte address 0x4 - core index']
  #allocation1 [shape = 'u32[144,128]{1,0:T(1,128)}', space=vmem, size = 0x12000, scoped, tag = 'internal scratch']
  %s0 = inlined_call_operand.hbm [shape: f32[8,2,4,64], index: 0, kind: input, shape index: {}]
  %s1 = inlined_call_operand.vmem [shape: f32[2,64], index: 1, kind: input, shape index: {}]
  %s2 = inlined_call_operand.vmem [shape: f32[2,64], index: 2, kind: input, shape index: {}]
  %s3 = inlined_call_operand.hbm [shape: f32[64,64], index: 3, kind: input, shape index: {}]
  %s4 = inlined_call_operand.hbm [shape: f32[64,64], index: 4, kind: input, shape index: {}]
  %s5 = inlined_call_operand.hbm [shape: f32[8,4,64], index: 5, kind: output, shape index: {}]
  %s6 = sld [smem:[#allocation0]]
  $region42: #{tpu_custom_call.1} parent=0
    _
  %s8 = ssub.s32 1, %s6
  %s9 = scalar_select 0, %s8, %s6
  $region1: #{tpu_custom_call.1} parent=0
    #allocation2 [shape = 'u8[32768]{0}', space=vmem, size = 0x8000, scoped, tag = 'input window, operand 0, single buffered']
    #allocation3 [shape = 's32[1]{0}', space=sflag, size = 0x4, scoped, tag = 'scoped memory for tpu_custom_call.1']
    #allocation4 [shape = 's32[1]{0}', space=sflag, size = 0x4, scoped, tag = 'scoped memory for tpu_custom_call.1']
    #allocation5 [shape = 'u8[32768]{0}', space=vmem, size = 0x8000, scoped, tag = 'input window, operand 3, single buffered']
    #allocation6 [shape = 's32[1]{0}', space=sflag, size = 0x4, scoped, tag = 'scoped memory for tpu_custom_call.1']
    #allocation7 [shape = 'u8[32768]{0}', space=vmem, size = 0x8000, scoped, tag = 'input window, operand 4, single buffered']
    #allocation8 [shape = 'u8[16384]{0}', space=vmem, size = 0x4000, scoped, tag = 'output window, operand 0, single buffered']
    %10 = vsyncpa [#allocation3], 0
    %11 = vsyncpa [#allocation6], 0
    %12 = vsyncpa [#allocation4], 0
    // Predicated region
    $region2: #{tpu_custom_call.1} parent=1 // pred_check
      _
    $region3: #{tpu_custom_call.1} parent=1 // pred_check_branch
      %14 = sbr.rel (0) target = $region5
    $region4: #{tpu_custom_call.1} parent=1 // pred_region
      %s16 = ssub.s32 1024, 1024
      %17 = vsyncadd [#allocation3], %s16
      %s18 = sshll.u32 [#allocation2], 4
      %s19 = int_to_ptr.vmem [resolvable:$true] %s18
      %24 = dma.hbm_to_vmem [thread:$0]  %s0, 1024, %s19, [#allocation3], 64, 64, 4
    $region5: #{tpu_custom_call.1} parent=1 // pred_fallthru
      _
    // Predicated region
    $region6: #{tpu_custom_call.1} parent=1 // pred_check
      _
    $region7: #{tpu_custom_call.1} parent=1 // pred_check_branch
      %26 = sbr.rel (0) target = $region9
    $region8: #{tpu_custom_call.1} parent=1 // pred_region
      _
    $region9: #{tpu_custom_call.1} parent=1 // pred_fallthru
      _
    // Predicated region
    $region10: #{tpu_custom_call.1} parent=1 // pred_check
      _
    $region11: #{tpu_custom_call.1} parent=1 // pred_check_branch
      %28 = sbr.rel (0) target = $region13
    $region12: #{tpu_custom_call.1} parent=1 // pred_region
      _
    $region13: #{tpu_custom_call.1} parent=1 // pred_fallthru
      _
    // Predicated region
    $region14: #{tpu_custom_call.1} parent=1 // pred_check
      _
    $region15: #{tpu_custom_call.1} parent=1 // pred_check_branch
      %30 = sbr.rel (0) target = $region17
    $region16: #{tpu_custom_call.1} parent=1 // pred_region
      %s32 = ssub.s32 1024, 1024
      %33 = vsyncadd [#allocation6], %s32
      %s34 = sshll.u32 [#allocation5], 4
      %s35 = int_to_ptr.vmem [resolvable:$true] %s34
      %40 = dma.hbm_to_vmem [thread:$0]  %s3, 1024, %s35, [#allocation6], 128, 128, 8
    $region17: #{tpu_custom_call.1} parent=1 // pred_fallthru
      _
    // Predicated region
    $region18: #{tpu_custom_call.1} parent=1 // pred_check
      _
    $region19: #{tpu_custom_call.1} parent=1 // pred_check_branch
      %42 = sbr.rel (0) target = $region21
    $region20: #{tpu_custom_call.1} parent=1 // pred_region
      %s44 = ssub.s32 1024, 1024
      %45 = vsyncadd [#allocation6], %s44
      %s46 = sshll.u32 [#allocation7], 4
      %s47 = int_to_ptr.vmem [resolvable:$true] %s46
      %52 = dma.hbm_to_vmem [thread:$0]  %s4, 1024, %s47, [#allocation6], 128, 128, 8
    $region21: #{tpu_custom_call.1} parent=1 // pred_fallthru
      _
    // Predicated region
    $region22: #{tpu_custom_call.1} parent=1 // pred_check
      _
    $region23: #{tpu_custom_call.1} parent=1 // pred_check_branch
      %54 = sbr.rel (0) target = $region25
    $region24: #{tpu_custom_call.1} parent=1 // pred_region
      %55 = dma.done [#allocation3], 1024
    $region25: #{tpu_custom_call.1} parent=1 // pred_fallthru
      _
    // Predicated region
    $region26: #{tpu_custom_call.1} parent=1 // pred_check
      _
    $region27: #{tpu_custom_call.1} parent=1 // pred_check_branch
      %57 = sbr.rel (0) target = $region29
    $region28: #{tpu_custom_call.1} parent=1 // pred_region
      %58 = dma.done [#allocation6], 1024
    $region29: #{tpu_custom_call.1} parent=1 // pred_fallthru
      _
    // Predicated region
    $region30: #{tpu_custom_call.1} parent=1 // pred_check
      _
    $region31: #{tpu_custom_call.1} parent=1 // pred_check_branch
      %60 = sbr.rel (0) target = $region33
    $region32: #{tpu_custom_call.1} parent=1 // pred_region
      %61 = dma.done [#allocation6], 1024
    $region33: #{tpu_custom_call.1} parent=1 // pred_fallthru
      _
    %v62 = vld [vmem:[%s1] sm:$0x3]
    %v63 = vld [vmem:[%s2] sm:$0x3]
    %v64 = vld [vmem:[#allocation5] sm:$0xff]
    %v65 = vld [vmem:[#allocation5 + $0x8] sm:$0xff]
    %v66 = vld [vmem:[#allocation5 + $0x10] sm:$0xff]
    %v67 = vld [vmem:[#allocation5 + $0x18] sm:$0xff]
    %v68 = vld [vmem:[#allocation5 + $0x20] sm:$0xff]
    %v69 = vld [vmem:[#allocation5 + $0x28] sm:$0xff]
    %v70 = vld [vmem:[#allocation5 + $0x30] sm:$0xff]
    %v71 = vld [vmem:[#allocation5 + $0x38] sm:$0xff]
    %v72 = vld [vmem:[#allocation7] sm:$0xff]
    %v73 = vld [vmem:[#allocation7 + $0x8] sm:$0xff]
    %v74 = vld [vmem:[#allocation7 + $0x10] sm:$0xff]
    %v75 = vld [vmem:[#allocation7 + $0x18] sm:$0xff]
    %v76 = vld [vmem:[#allocation7 + $0x20] sm:$0xff]
    %v77 = vld [vmem:[#allocation7 + $0x28] sm:$0xff]
    %v78 = vld [vmem:[#allocation7 + $0x30] sm:$0xff]
    %v79 = vld [vmem:[#allocation7 + $0x38] sm:$0xff]
    %v80 = vld [vmem:[#allocation2] sm:$0x1]
    %v81 = vld [vmem:[#allocation2 + $0x8] sm:$0x1]
    %v82 = vld [vmem:[#allocation2 + $0x10] sm:$0x1]
    %v83 = vld [vmem:[#allocation2 + $0x18] sm:$0x1]
    %v84 = vld [vmem:[#allocation2 + $0x20] sm:$0x1]
    %v85 = vld [vmem:[#allocation2 + $0x28] sm:$0x1]
    %v86 = vld [vmem:[#allocation2 + $0x30] sm:$0x1]
    %v87 = vld [vmem:[#allocation2 + $0x38] sm:$0x1]
    %s88 = scalar_lea.vmem [#allocation2], 4
    %v89 = vld [vmem:[%s88] sm:$0x1]
    %v90 = vld [vmem:[%s88 + $0x8] sm:$0x1]
    %v91 = vld [vmem:[%s88 + $0x10] sm:$0x1]
    %v92 = vld [vmem:[%s88 + $0x18] sm:$0x1]
    %v93 = vld [vmem:[%s88 + $0x20] sm:$0x1]
    %v94 = vld [vmem:[%s88 + $0x28] sm:$0x1]
    %v95 = vld [vmem:[%s88 + $0x30] sm:$0x1]
    %v96 = vld [vmem:[%s88 + $0x38] sm:$0x1]
    %v105 = vrot.slane %v81, 7
    %vm106 = vcmask 1041409
    %v107 = vsel %vm106, %v105, %v80
    %v108 = vrot.slane %v82, 6
    %vm109 = vcmask 1042434
    %v110 = vsel %vm109, %v108, %v107
    %v111 = vrot.slane %v83, 5
    %vm112 = vcmask 1043459
    %v113 = vsel %vm112, %v111, %v110
    %v114 = vrot.slane %v84, 4
    %vm115 = vcmask 1044484
    %v116 = vsel %vm115, %v114, %v113
    %v117 = vrot.slane %v85, 3
    %vm118 = vcmask 1045509
    %v119 = vsel %vm118, %v117, %v116
    %v120 = vrot.slane %v86, 2
    %vm121 = vcmask 1046534
    %v122 = vsel %vm121, %v120, %v119
    %v123 = vrot.slane %v87, 1
    %vm124 = vcmask 1047559
    %v125 = vsel %vm124, %v123, %v122
    %vm127 = vcmask 523264
    %v128 = vsel %vm127, %v125, 0.0
    %129 = vadd.xlane.f32.xlu0 %v128
    %v130 = vpop.xlane.xlu0 %129
    %v139 = vrot.slane %v90, 7
    %v140 = vsel %vm106, %v139, %v89
    %v141 = vrot.slane %v91, 6
    %v142 = vsel %vm109, %v141, %v140
    %v143 = vrot.slane %v92, 5
    %v144 = vsel %vm112, %v143, %v142
    %v145 = vrot.slane %v93, 4
    %v146 = vsel %vm115, %v145, %v144
    %v147 = vrot.slane %v94, 3
    %v148 = vsel %vm118, %v147, %v146
    %v149 = vrot.slane %v95, 2
    %v150 = vsel %vm121, %v149, %v148
    %v151 = vrot.slane %v96, 1
    %v152 = vsel %vm124, %v151, %v150
    %v154 = vsel %vm127, %v152, 0.0
    %155 = vadd.xlane.f32.xlu0 %v154
    %v156 = vpop.xlane.xlu0 %155
    %v157 = vadd.f32 %v130, %v156
    %v158 = vmul.f32 %v157, 0.0078125
    %v160 = vrot.slane %v158, 1
    %v161 = vrot.slane %v158, 2
    %v162 = vrot.slane %v158, 3
    %v163 = vrot.slane %v158, 4
    %v164 = vrot.slane %v158, 5
    %v165 = vrot.slane %v158, 6
    %v166 = vrot.slane %v158, 7
    %v175 = vsub.f32 %v80, %v158
    %v176 = vsub.f32 %v81, %v160
    %v177 = vsub.f32 %v82, %v161
    %v178 = vsub.f32 %v83, %v162
    %v179 = vsub.f32 %v84, %v163
    %v180 = vsub.f32 %v85, %v164
    %v181 = vsub.f32 %v86, %v165
    %v182 = vsub.f32 %v87, %v166
    %v183 = vsub.f32 %v89, %v158
    %v184 = vsub.f32 %v90, %v160
    %v185 = vsub.f32 %v91, %v161
    %v186 = vsub.f32 %v92, %v162
    %v187 = vsub.f32 %v93, %v163
    %v188 = vsub.f32 %v94, %v164
    %v189 = vsub.f32 %v95, %v165
    %v190 = vsub.f32 %v96, %v166
    %v191 = vmul.f32 %v175, %v175
    %v192 = vmul.f32 %v176, %v176
    %v193 = vmul.f32 %v177, %v177
    %v194 = vmul.f32 %v178, %v178
    %v195 = vmul.f32 %v179, %v179
    %v196 = vmul.f32 %v180, %v180
    %v197 = vmul.f32 %v181, %v181
    %v198 = vmul.f32 %v182, %v182
    %v207 = vrot.slane %v192, 7
    %v208 = vsel %vm106, %v207, %v191
    %v209 = vrot.slane %v193, 6
    %v210 = vsel %vm109, %v209, %v208
    %v211 = vrot.slane %v194, 5
    %v212 = vsel %vm112, %v211, %v210
    %v213 = vrot.slane %v195, 4
    %v214 = vsel %vm115, %v213, %v212
    %v215 = vrot.slane %v196, 3
    %v216 = vsel %vm118, %v215, %v214
    %v217 = vrot.slane %v197, 2
    %v218 = vsel %vm121, %v217, %v216
    %v219 = vrot.slane %v198, 1
    %v220 = vsel %vm124, %v219, %v218
    %v222 = vsel %vm127, %v220, 0.0
    %223 = vadd.xlane.f32.xlu0 %v222
    %v224 = vpop.xlane.xlu0 %223
    %v225 = vmul.f32 %v183, %v183
    %v226 = vmul.f32 %v184, %v184
    %v227 = vmul.f32 %v185, %v185
    %v228 = vmul.f32 %v186, %v186
    %v229 = vmul.f32 %v187, %v187
    %v230 = vmul.f32 %v188, %v188
    %v231 = vmul.f32 %v189, %v189
    %v232 = vmul.f32 %v190, %v190
    %v241 = vrot.slane %v226, 7
    %v242 = vsel %vm106, %v241, %v225
    %v243 = vrot.slane %v227, 6
    %v244 = vsel %vm109, %v243, %v242
    %v245 = vrot.slane %v228, 5
    %v246 = vsel %vm112, %v245, %v244
    %v247 = vrot.slane %v229, 4
    %v248 = vsel %vm115, %v247, %v246
    %v249 = vrot.slane %v230, 3
    %v250 = vsel %vm118, %v249, %v248
    %v251 = vrot.slane %v231, 2
    %v252 = vsel %vm121, %v251, %v250
    %v253 = vrot.slane %v232, 1
    %v254 = vsel %vm124, %v253, %v252
    %v256 = vsel %vm127, %v254, 0.0
    %257 = vadd.xlane.f32.xlu0 %v256
    %v258 = vpop.xlane.xlu0 %257
    %v259 = vadd.f32 %v224, %v258
    %v260 = vmul.f32 %v259, 0.0078125
    %v261 = vadd.f32 %v260, 1e-05
    %v262 = vrsqrt.pop %v261
    %v264 = vrot.slane %v262, 1
    %v265 = vrot.slane %v262, 2
    %v266 = vrot.slane %v262, 3
    %v267 = vrot.slane %v262, 4
    %v268 = vrot.slane %v262, 5
    %v269 = vrot.slane %v262, 6
    %v270 = vrot.slane %v262, 7
    %v279 = vmul.f32 %v175, %v262
    %v280 = vmul.f32 %v176, %v264
    %v281 = vmul.f32 %v177, %v265
    %v282 = vmul.f32 %v178, %v266
    %v283 = vmul.f32 %v179, %v267
    %v284 = vmul.f32 %v180, %v268
    %v285 = vmul.f32 %v181, %v269
    %v286 = vmul.f32 %v182, %v270
    %v287 = vlaneseq
    %v288 = vshrl.u32 %v287, 7
    %v289 = vsub.s32 0, %v288
    %v290 = vrot.slane %v62, %v289
    %v291 = vmul.f32 %v279, %v290
    %v292 = vmul.f32 %v280, %v290
    %v293 = vmul.f32 %v281, %v290
    %v294 = vmul.f32 %v282, %v290
    %v295 = vmul.f32 %v283, %v290
    %v296 = vmul.f32 %v284, %v290
    %v297 = vmul.f32 %v285, %v290
    %v298 = vmul.f32 %v286, %v290
    %v299 = vlaneseq
    %v300 = vshrl.u32 %v299, 7
    %v301 = vsub.s32 0, %v300
    %v302 = vrot.slane %v63, %v301
    %v303 = vadd.f32 %v291, %v302
    %v304 = vadd.f32 %v292, %v302
    %v305 = vadd.f32 %v293, %v302
    %v306 = vadd.f32 %v294, %v302
    %v307 = vadd.f32 %v295, %v302
    %v308 = vadd.f32 %v296, %v302
    %v309 = vadd.f32 %v297, %v302
    %v310 = vadd.f32 %v298, %v302
    %v311 = vmul.f32 %v183, %v262
    %v312 = vmul.f32 %v184, %v264
    %v313 = vmul.f32 %v185, %v265
    %v314 = vmul.f32 %v186, %v266
    %v315 = vmul.f32 %v187, %v267
    %v316 = vmul.f32 %v188, %v268
    %v317 = vmul.f32 %v189, %v269
    %v318 = vmul.f32 %v190, %v270
    %v319 = vlaneseq
    %v320 = vshrl.u32 %v319, 7
    %v321 = vsub.s32 1, %v320
    %v322 = vrot.slane %v62, %v321
    %v323 = vmul.f32 %v311, %v322
    %v324 = vmul.f32 %v312, %v322
    %v325 = vmul.f32 %v313, %v322
    %v326 = vmul.f32 %v314, %v322
    %v327 = vmul.f32 %v315, %v322
    %v328 = vmul.f32 %v316, %v322
    %v329 = vmul.f32 %v317, %v322
    %v330 = vmul.f32 %v318, %v322
    %v331 = vlaneseq
    %v332 = vshrl.u32 %v331, 7
    %v333 = vsub.s32 1, %v332
    %v334 = vrot.slane %v63, %v333
    %v335 = vadd.f32 %v323, %v334
    %v336 = vadd.f32 %v324, %v334
    %v337 = vadd.f32 %v325, %v334
    %v338 = vadd.f32 %v326, %v334
    %v339 = vadd.f32 %v327, %v334
    %v340 = vadd.f32 %v328, %v334
    %v341 = vadd.f32 %v329, %v334
    %v342 = vadd.f32 %v330, %v334
    %v351 = vrot.slane %v336, 7
    %v352 = vsel %vm106, %v351, %v335
    %v353 = vrot.slane %v337, 6
    %v354 = vsel %vm109, %v353, %v352
    %v355 = vrot.slane %v338, 5
    %v356 = vsel %vm112, %v355, %v354
    %v357 = vrot.slane %v339, 4
    %v358 = vsel %vm115, %v357, %v356
    %v359 = vrot.slane %v340, 3
    %v360 = vsel %vm118, %v359, %v358
    %v361 = vrot.slane %v341, 2
    %v362 = vsel %vm121, %v361, %v360
    %v363 = vrot.slane %v342, 1
    %v364 = vsel %vm124, %v363, %v362
    %v365 = vsel %vm127, %v364, 0
    %367 = vmatprep.subr.mxu0 0.0
    %368 = vmatpush1.msra.mxu0 %v72
    %369 = vmatprep.subr.mxu0 0.0
    %370 = vmatpush1.msra.mxu0 %v73
    %371 = vmatprep.subr.mxu0 0.0
    %372 = vmatpush1.msra.mxu0 %v74
    %373 = vmatprep.subr.mxu0 0.0
    %374 = vmatpush1.msra.mxu0 %v75
    %375 = vmatprep.subr.mxu0 0.0
    %376 = vmatpush1.msra.mxu0 %v76
    %377 = vmatprep.subr.mxu0 0.0
    %378 = vmatpush1.msra.mxu0 %v77
    %379 = vmatprep.subr.mxu0 0.0
    %380 = vmatpush1.msra.mxu0 %v78
    %381 = vmatprep.subr.mxu0 0.0
    %382 = vmatpush1.msra.mxu0 %v79
    %383 = vmatprep.subr.mxu0 0.0
    %384 = vmatpush1.msra.mxu0 0.0
    %385 = vmatprep.subr.mxu0 0.0
    %386 = vmatpush1.msra.mxu0 0.0
    %387 = vmatprep.subr.mxu0 0.0
    %388 = vmatpush1.msra.mxu0 0.0
    %389 = vmatprep.subr.mxu0 0.0
    %390 = vmatpush1.msra.mxu0 0.0
    %391 = vmatprep.subr.mxu0 0.0
    %392 = vmatpush1.msra.mxu0 0.0
    %393 = vmatprep.subr.mxu0 0.0
    %394 = vmatpush1.msra.mxu0 0.0
    %395 = vmatprep.subr.mxu0 0.0
    %396 = vmatpush1.msra.mxu0 0.0
    %397 = vmatprep.subr.mxu0 0.0
    %398 = vmatpush1.msra.mxu0 0.0
    %399 = vmatprep.subr.mxu0 0.0
    %400 = vmatpush1.msra.mxu0 0.0
    %401 = vmatprep.subr.mxu0 0.0
    %402 = vmatpush1.msra.mxu0 0.0
    %403 = vmatprep.subr.mxu0 0.0
    %404 = vmatpush1.msra.mxu0 0.0
    %405 = vmatprep.subr.mxu0 0.0
    %406 = vmatpush1.msra.mxu0 0.0
    %407 = vmatprep.subr.mxu0 0.0
    %408 = vmatpush1.msra.mxu0 0.0
    %409 = vmatprep.subr.mxu0 0.0
    %410 = vmatpush1.msra.mxu0 0.0
    %411 = vmatprep.subr.mxu0 0.0
    %412 = vmatpush1.msra.mxu0 0.0
    %413 = vmatprep.subr.mxu0 0.0
    %414 = vmatpush1.msra.mxu0 0.0
    %415 = vmatprep.subr.mxu0 0.0
    %416 = vmatpush1.msra.mxu0 0.0
    %417 = vmatprep.subr.mxu0 0.0
    %418 = vmatpush1.msra.mxu0 0.0
    %419 = vmatprep.subr.mxu0 0.0
    %420 = vmatpush1.msra.mxu0 0.0
    %421 = vmatprep.subr.mxu0 0.0
    %422 = vmatpush1.msra.mxu0 0.0
    %423 = vmatprep.subr.mxu0 0.0
    %424 = vmatpush1.msra.mxu0 0.0
    %425 = vmatprep.subr.mxu0 0.0
    %426 = vmatpush1.msra.mxu0 0.0
    %427 = vmatprep.subr.mxu0 0.0
    %428 = vmatpush1.msra.mxu0 0.0
    %429 = vmatprep.subr.mxu0 0.0
    %430 = vmatpush1.msra.mxu0 0.0
    %431 = vmatprep.mubr.f32.mxu0 0.0
    %432 = vmatmul.mubr.f32.gmra.mrb[0].mxu0 %v365
    %v433 = vpop.f32.mrb[0].mxu0
    %v434 = vadd.f32 0.0, %v433
    %v435 = vpop.f32.mrb[0].mxu0
    %436 = vdwg.mxu0
    %v445 = vrot.slane %v304, 7
    %v446 = vsel %vm106, %v445, %v303
    %v447 = vrot.slane %v305, 6
    %v448 = vsel %vm109, %v447, %v446
    %v449 = vrot.slane %v306, 5
    %v450 = vsel %vm112, %v449, %v448
    %v451 = vrot.slane %v307, 4
    %v452 = vsel %vm115, %v451, %v450
    %v453 = vrot.slane %v308, 3
    %v454 = vsel %vm118, %v453, %v452
    %v455 = vrot.slane %v309, 2
    %v456 = vsel %vm121, %v455, %v454
    %v457 = vrot.slane %v310, 1
    %v458 = vsel %vm124, %v457, %v456
    %v459 = vsel %vm127, %v458, 0
    %461 = vmatprep.subr.mxu0 0.0
    %462 = vmatpush1.msra.mxu0 %v64
    %463 = vmatprep.subr.mxu0 0.0
    %464 = vmatpush1.msra.mxu0 %v65
    %465 = vmatprep.subr.mxu0 0.0
    %466 = vmatpush1.msra.mxu0 %v66
    %467 = vmatprep.subr.mxu0 0.0
    %468 = vmatpush1.msra.mxu0 %v67
    %469 = vmatprep.subr.mxu0 0.0
    %470 = vmatpush1.msra.mxu0 %v68
    %471 = vmatprep.subr.mxu0 0.0
    %472 = vmatpush1.msra.mxu0 %v69
    %473 = vmatprep.subr.mxu0 0.0
    %474 = vmatpush1.msra.mxu0 %v70
    %475 = vmatprep.subr.mxu0 0.0
    %476 = vmatpush1.msra.mxu0 %v71
    %477 = vmatprep.subr.mxu0 0.0
    %478 = vmatpush1.msra.mxu0 0.0
    %479 = vmatprep.subr.mxu0 0.0
    %480 = vmatpush1.msra.mxu0 0.0
    %481 = vmatprep.subr.mxu0 0.0
    %482 = vmatpush1.msra.mxu0 0.0
    %483 = vmatprep.subr.mxu0 0.0
    %484 = vmatpush1.msra.mxu0 0.0
    %485 = vmatprep.subr.mxu0 0.0
    %486 = vmatpush1.msra.mxu0 0.0
    %487 = vmatprep.subr.mxu0 0.0
    %488 = vmatpush1.msra.mxu0 0.0
    %489 = vmatprep.subr.mxu0 0.0
    %490 = vmatpush1.msra.mxu0 0.0
    %491 = vmatprep.subr.mxu0 0.0
    %492 = vmatpush1.msra.mxu0 0.0
    %493 = vmatprep.subr.mxu0 0.0
    %494 = vmatpush1.msra.mxu0 0.0
    %495 = vmatprep.subr.mxu0 0.0
    %496 = vmatpush1.msra.mxu0 0.0
    %497 = vmatprep.subr.mxu0 0.0
    %498 = vmatpush1.msra.mxu0 0.0
    %499 = vmatprep.subr.mxu0 0.0
    %500 = vmatpush1.msra.mxu0 0.0
    %501 = vmatprep.subr.mxu0 0.0
    %502 = vmatpush1.msra.mxu0 0.0
    %503 = vmatprep.subr.mxu0 0.0
    %504 = vmatpush1.msra.mxu0 0.0
    %505 = vmatprep.subr.mxu0 0.0
    %506 = vmatpush1.msra.mxu0 0.0
    %507 = vmatprep.subr.mxu0 0.0
    %508 = vmatpush1.msra.mxu0 0.0
    %509 = vmatprep.subr.mxu0 0.0
    %510 = vmatpush1.msra.mxu0 0.0
    %511 = vmatprep.subr.mxu0 0.0
    %512 = vmatpush1.msra.mxu0 0.0
    %513 = vmatprep.subr.mxu0 0.0
    %514 = vmatpush1.msra.mxu0 0.0
    %515 = vmatprep.subr.mxu0 0.0
    %516 = vmatpush1.msra.mxu0 0.0
    %517 = vmatprep.subr.mxu0 0.0
    %518 = vmatpush1.msra.mxu0 0.0
    %519 = vmatprep.subr.mxu0 0.0
    %520 = vmatpush1.msra.mxu0 0.0
    %521 = vmatprep.subr.mxu0 0.0
    %522 = vmatpush1.msra.mxu0 0.0
    %523 = vmatprep.subr.mxu0 0.0
    %524 = vmatpush1.msra.mxu0 0.0
    %525 = vmatprep.mubr.f32.mxu0 0.0
    %526 = vmatmul.mubr.f32.gmra.mrb[0].mxu0 %v459
    %v527 = vpop.f32.mrb[0].mxu0
    %v528 = vadd.f32 %v434, %v527
    %v529 = vpop.f32.mrb[0].mxu0
    %530 = vdwg.mxu0
    %v532 = vcombine.high %v528, %v528
    %v534 = vunpack.c.l.s4 1966171168
    %v535 = vunpack.c.0.s8 %v534
    %v536 = vlaneseq
    %v537 = vshrl.u32 %v536, 7
    %v538 = vsub.s32 %v535, %v537
    %v539 = vrot.slane %v528, %v538
    %v541 = vunpack.c.l.s4 1966171168
    %v542 = vunpack.c.0.s8 %v541
    %v543 = vlaneseq
    %v544 = vshrl.u32 %v543, 7
    %v545 = vsub.s32 %v542, %v544
    %v546 = vrot.slane %v532, %v545
    %v547 = vcombine.high %v539, %v539
    %v548 = vcombine.high %v546, %v546
    %v550 = vunpack.c.l.s4 1966171168
    %v551 = vunpack.c.0.s8 %v550
    %v552 = vlaneseq
    %v553 = vshrl.u32 %v552, 7
    %v554 = vsub.s32 %v551, %v553
    %v555 = vrot.slane %v539, %v554
    %v557 = vunpack.c.l.s4 1966171168
    %v558 = vunpack.c.0.s8 %v557
    %v559 = vlaneseq
    %v560 = vshrl.u32 %v559, 7
    %v561 = vsub.s32 %v558, %v560
    %v562 = vrot.slane %v546, %v561
    %v564 = vunpack.c.l.s4 1966171168
    %v565 = vunpack.c.0.s8 %v564
    %v566 = vlaneseq
    %v567 = vshrl.u32 %v566, 7
    %v568 = vsub.s32 %v565, %v567
    %v569 = vrot.slane %v547, %v568
    %v571 = vunpack.c.l.s4 1966171168
    %v572 = vunpack.c.0.s8 %v571
    %v573 = vlaneseq
    %v574 = vshrl.u32 %v573, 7
    %v575 = vsub.s32 %v572, %v574
    %v576 = vrot.slane %v548, %v575
    %v577 = vcombine.high %v555, %v555
    %v578 = vcombine.high %v562, %v562
    %v579 = vcombine.high %v569, %v569
    %v580 = vcombine.high %v576, %v576
    %vm589 = vcmask 516096
    %590 = vst.msk [vmem:[#allocation8] sm:$0x1] %vm589, %v555
    %591 = vst.msk [vmem:[#allocation8 + $0x4] sm:$0x1] %vm589, %v569
    %592 = vst.msk [vmem:[#allocation8 + $0x8] sm:$0x1] %vm589, %v577
    %593 = vst.msk [vmem:[#allocation8 + $0xc] sm:$0x1] %vm589, %v579
    %594 = vst.msk [vmem:[#allocation8 + $0x10] sm:$0x1] %vm589, %v562
    %595 = vst.msk [vmem:[#allocation8 + $0x14] sm:$0x1] %vm589, %v576
    %596 = vst.msk [vmem:[#allocation8 + $0x18] sm:$0x1] %vm589, %v578
    %597 = vst.msk [vmem:[#allocation8 + $0x1c] sm:$0x1] %vm589, %v580
    %v598 = vld [vmem:[#allocation2 + $0x1] sm:$0x1]
    %v599 = vld [vmem:[#allocation2 + $0x9] sm:$0x1]
    %v600 = vld [vmem:[#allocation2 + $0x11] sm:$0x1]
    %v601 = vld [vmem:[#allocation2 + $0x19] sm:$0x1]
    %v602 = vld [vmem:[#allocation2 + $0x21] sm:$0x1]
    %v603 = vld [vmem:[#allocation2 + $0x29] sm:$0x1]
    %v604 = vld [vmem:[#allocation2 + $0x31] sm:$0x1]
    %v605 = vld [vmem:[#allocation2 + $0x39] sm:$0x1]
    %v606 = vld [vmem:[%s88 + $0x1] sm:$0x1]
    %v607 = vld [vmem:[%s88 + $0x9] sm:$0x1]
    %v608 = vld [vmem:[%s88 + $0x11] sm:$0x1]
    %v609 = vld [vmem:[%s88 + $0x19] sm:$0x1]
    %v610 = vld [vmem:[%s88 + $0x21] sm:$0x1]
    %v611 = vld [vmem:[%s88 + $0x29] sm:$0x1]
    %v612 = vld [vmem:[%s88 + $0x31] sm:$0x1]
    %v613 = vld [vmem:[%s88 + $0x39] sm:$0x1]
    %v622 = vrot.slane %v599, 7
    %v623 = vsel %vm106, %v622, %v598
    %v624 = vrot.slane %v600, 6
    %v625 = vsel %vm109, %v624, %v623
    %v626 = vrot.slane %v601, 5
    %v627 = vsel %vm112, %v626, %v625
    %v628 = vrot.slane %v602, 4
    %v629 = vsel %vm115, %v628, %v627
    %v630 = vrot.slane %v603, 3
    %v631 = vsel %vm118, %v630, %v629
    %v632 = vrot.slane %v604, 2
    %v633 = vsel %vm121, %v632, %v631
    %v634 = vrot.slane %v605, 1
    %v635 = vsel %vm124, %v634, %v633
    %v637 = vsel %vm127, %v635, 0.0
    %638 = vadd.xlane.f32.xlu0 %v637
    %v639 = vpop.xlane.xlu0 %638
    %v648 = vrot.slane %v607, 7
    %v649 = vsel %vm106, %v648, %v606
    %v650 = vrot.slane %v608, 6
    %v651 = vsel %vm109, %v650, %v649
    %v652 = vrot.slane %v609, 5
    %v653 = vsel %vm112, %v652, %v651
    %v654 = vrot.slane %v610, 4
    %v655 = vsel %vm115, %v654, %v653
    %v656 = vrot.slane %v611, 3
    %v657 = vsel %vm118, %v656, %v655
    %v658 = vrot.slane %v612, 2
    %v659 = vsel %vm121, %v658, %v657
    %v660 = vrot.slane %v613, 1
    %v661 = vsel %vm124, %v660, %v659
    %v663 = vsel %vm127, %v661, 0.0
    %664 = vadd.xlane.f32.xlu0 %v663
    %v665 = vpop.xlane.xlu0 %664
    %v666 = vadd.f32 %v639, %v665
    %v667 = vmul.f32 %v666, 0.0078125
    %v669 = vrot.slane %v667, 1
    %v670 = vrot.slane %v667, 2
    %v671 = vrot.slane %v667, 3
    %v672 = vrot.slane %v667, 4
    %v673 = vrot.slane %v667, 5
    %v674 = vrot.slane %v667, 6
    %v675 = vrot.slane %v667, 7
    %v684 = vsub.f32 %v598, %v667
    %v685 = vsub.f32 %v599, %v669
    %v686 = vsub.f32 %v600, %v670
    %v687 = vsub.f32 %v601, %v671
    %v688 = vsub.f32 %v602, %v672
    %v689 = vsub.f32 %v603, %v673
    %v690 = vsub.f32 %v604, %v674
    %v691 = vsub.f32 %v605, %v675
    %v692 = vsub.f32 %v606, %v667
    %v693 = vsub.f32 %v607, %v669
    %v694 = vsub.f32 %v608, %v670
    %v695 = vsub.f32 %v609, %v671
    %v696 = vsub.f32 %v610, %v672
    %v697 = vsub.f32 %v611, %v673
    %v698 = vsub.f32 %v612, %v674
    %v699 = vsub.f32 %v613, %v675
    %v700 = vmul.f32 %v684, %v684
    %v701 = vmul.f32 %v685, %v685
    %v702 = vmul.f32 %v686, %v686
    %v703 = vmul.f32 %v687, %v687
    %v704 = vmul.f32 %v688, %v688
    %v705 = vmul.f32 %v689, %v689
    %v706 = vmul.f32 %v690, %v690
    %v707 = vmul.f32 %v691, %v691
    %v716 = vrot.slane %v701, 7
    %v717 = vsel %vm106, %v716, %v700
    %v718 = vrot.slane %v702, 6
    %v719 = vsel %vm109, %v718, %v717
    %v720 = vrot.slane %v703, 5
    %v721 = vsel %vm112, %v720, %v719
    %v722 = vrot.slane %v704, 4
    %v723 = vsel %vm115, %v722, %v721
    %v724 = vrot.slane %v705, 3
    %v725 = vsel %vm118, %v724, %v723
    %v726 = vrot.slane %v706, 2
    %v727 = vsel %vm121, %v726, %v725
    %v728 = vrot.slane %v707, 1
    %v729 = vsel %vm124, %v728, %v727
    %v731 = vsel %vm127, %v729, 0.0
    %732 = vadd.xlane.f32.xlu0 %v731
    %v733 = vpop.xlane.xlu0 %732
    %v734 = vmul.f32 %v692, %v692
    %v735 = vmul.f32 %v693, %v693
    %v736 = vmul.f32 %v694, %v694
    %v737 = vmul.f32 %v695, %v695
    %v738 = vmul.f32 %v696, %v696
    %v739 = vmul.f32 %v697, %v697
    %v740 = vmul.f32 %v698, %v698
    %v741 = vmul.f32 %v699, %v699
    %v750 = vrot.slane %v735, 7
    %v751 = vsel %vm106, %v750, %v734
    %v752 = vrot.slane %v736, 6
    %v753 = vsel %vm109, %v752, %v751
    %v754 = vrot.slane %v737, 5
    %v755 = vsel %vm112, %v754, %v753
    %v756 = vrot.slane %v738, 4
    %v757 = vsel %vm115, %v756, %v755
    %v758 = vrot.slane %v739, 3
    %v759 = vsel %vm118, %v758, %v757
    %v760 = vrot.slane %v740, 2
    %v761 = vsel %vm121, %v760, %v759
    %v762 = vrot.slane %v741, 1
    %v763 = vsel %vm124, %v762, %v761
    %v765 = vsel %vm127, %v763, 0.0
    %766 = vadd.xlane.f32.xlu0 %v765
    %v767 = vpop.xlane.xlu0 %766
    %v768 = vadd.f32 %v733, %v767
    %v769 = vmul.f32 %v768, 0.0078125
    %v770 = vadd.f32 %v769, 1e-05
    %v771 = vrsqrt.pop %v770
    %v773 = vrot.slane %v771, 1
    %v774 = vrot.slane %v771, 2
    %v775 = vrot.slane %v771, 3
    %v776 = vrot.slane %v771, 4
    %v777 = vrot.slane %v771, 5
    %v778 = vrot.slane %v771, 6
    %v779 = vrot.slane %v771, 7
    %v788 = vmul.f32 %v684, %v771
    %v789 = vmul.f32 %v685, %v773
    %v790 = vmul.f32 %v686, %v774
    %v791 = vmul.f32 %v687, %v775
    %v792 = vmul.f32 %v688, %v776
    %v793 = vmul.f32 %v689, %v777
    %v794 = vmul.f32 %v690, %v778
    %v795 = vmul.f32 %v691, %v779
    %v796 = vmul.f32 %v788, %v290
    %v797 = vmul.f32 %v789, %v290
    %v798 = vmul.f32 %v790, %v290
    %v799 = vmul.f32 %v791, %v290
    %v800 = vmul.f32 %v792, %v290
    %v801 = vmul.f32 %v793, %v290
    %v802 = vmul.f32 %v794, %v290
    %v803 = vmul.f32 %v795, %v290
    %v804 = vadd.f32 %v796, %v302
    %v805 = vadd.f32 %v797, %v302
    %v806 = vadd.f32 %v798, %v302
    %v807 = vadd.f32 %v799, %v302
    %v808 = vadd.f32 %v800, %v302
    %v809 = vadd.f32 %v801, %v302
    %v810 = vadd.f32 %v802, %v302
    %v811 = vadd.f32 %v803, %v302
    %v812 = vmul.f32 %v692, %v771
    %v813 = vmul.f32 %v693, %v773
    %v814 = vmul.f32 %v694, %v774
    %v815 = vmul.f32 %v695, %v775
    %v816 = vmul.f32 %v696, %v776
    %v817 = vmul.f32 %v697, %v777
    %v818 = vmul.f32 %v698, %v778
    %v819 = vmul.f32 %v699, %v779
    %v820 = vmul.f32 %v812, %v322
    %v821 = vmul.f32 %v813, %v322
    %v822 = vmul.f32 %v814, %v322
    %v823 = vmul.f32 %v815, %v322
    %v824 = vmul.f32 %v816, %v322
    %v825 = vmul.f32 %v817, %v322
    %v826 = vmul.f32 %v818, %v322
    %v827 = vmul.f32 %v819, %v322
    %v828 = vadd.f32 %v820, %v334
    %v829 = vadd.f32 %v821, %v334
    %v830 = vadd.f32 %v822, %v334
    %v831 = vadd.f32 %v823, %v334
    %v832 = vadd.f32 %v824, %v334
    %v833 = vadd.f32 %v825, %v334
    %v834 = vadd.f32 %v826, %v334
    %v835 = vadd.f32 %v827, %v334
    %v844 = vrot.slane %v829, 7
    %v845 = vsel %vm106, %v844, %v828
    %v846 = vrot.slane %v830, 6
    %v847 = vsel %vm109, %v846, %v845
    %v848 = vrot.slane %v831, 5
    %v849 = vsel %vm112, %v848, %v847
    %v850 = vrot.slane %v832, 4
    %v851 = vsel %vm115, %v850, %v849
    %v852 = vrot.slane %v833, 3
    %v853 = vsel %vm118, %v852, %v851
    %v854 = vrot.slane %v834, 2
    %v855 = vsel %vm121, %v854, %v853
    %v856 = vrot.slane %v835, 1
    %v857 = vsel %vm124, %v856, %v855
    %v858 = vsel %vm127, %v857, 0
    %860 = vmatprep.subr.mxu0 0.0
    %861 = vmatpush1.msra.mxu0 %v72
    %862 = vmatprep.subr.mxu0 0.0
    %863 = vmatpush1.msra.mxu0 %v73
    %864 = vmatprep.subr.mxu0 0.0
    %865 = vmatpush1.msra.mxu0 %v74
    %866 = vmatprep.subr.mxu0 0.0
    %867 = vmatpush1.msra.mxu0 %v75
    %868 = vmatprep.subr.mxu0 0.0
    %869 = vmatpush1.msra.mxu0 %v76
    %870 = vmatprep.subr.mxu0 0.0
    %871 = vmatpush1.msra.mxu0 %v77
    %872 = vmatprep.subr.mxu0 0.0
    %873 = vmatpush1.msra.mxu0 %v78
    %874 = vmatprep.subr.mxu0 0.0
    %875 = vmatpush1.msra.mxu0 %v79
    %876 = vmatprep.subr.mxu0 0.0
    %877 = vmatpush1.msra.mxu0 0.0
    %878 = vmatprep.subr.mxu0 0.0
    %879 = vmatpush1.msra.mxu0 0.0
    %880 = vmatprep.subr.mxu0 0.0
    %881 = vmatpush1.msra.mxu0 0.0
    %882 = vmatprep.subr.mxu0 0.0
    %883 = vmatpush1.msra.mxu0 0.0
    %884 = vmatprep.subr.mxu0 0.0
    %885 = vmatpush1.msra.mxu0 0.0
    %886 = vmatprep.subr.mxu0 0.0
    %887 = vmatpush1.msra.mxu0 0.0
    %888 = vmatprep.subr.mxu0 0.0
    %889 = vmatpush1.msra.mxu0 0.0
    %890 = vmatprep.subr.mxu0 0.0
    %891 = vmatpush1.msra.mxu0 0.0
    %892 = vmatprep.subr.mxu0 0.0
    %893 = vmatpush1.msra.mxu0 0.0
    %894 = vmatprep.subr.mxu0 0.0
    %895 = vmatpush1.msra.mxu0 0.0
    %896 = vmatprep.subr.mxu0 0.0
    %897 = vmatpush1.msra.mxu0 0.0
    %898 = vmatprep.subr.mxu0 0.0
    %899 = vmatpush1.msra.mxu0 0.0
    %900 = vmatprep.subr.mxu0 0.0
    %901 = vmatpush1.msra.mxu0 0.0
    %902 = vmatprep.subr.mxu0 0.0
    %903 = vmatpush1.msra.mxu0 0.0
    %904 = vmatprep.subr.mxu0 0.0
    %905 = vmatpush1.msra.mxu0 0.0
    %906 = vmatprep.subr.mxu0 0.0
    %907 = vmatpush1.msra.mxu0 0.0
    %908 = vmatprep.subr.mxu0 0.0
    %909 = vmatpush1.msra.mxu0 0.0
    %910 = vmatprep.subr.mxu0 0.0
    %911 = vmatpush1.msra.mxu0 0.0
    %912 = vmatprep.subr.mxu0 0.0
    %913 = vmatpush1.msra.mxu0 0.0
    %914 = vmatprep.subr.mxu0 0.0
    %915 = vmatpush1.msra.mxu0 0.0
    %916 = vmatprep.subr.mxu0 0.0
    %917 = vmatpush1.msra.mxu0 0.0
    %918 = vmatprep.subr.mxu0 0.0
    %919 = vmatpush1.msra.mxu0 0.0
    %920 = vmatprep.subr.mxu0 0.0
    %921 = vmatpush1.msra.mxu0 0.0
    %922 = vmatprep.subr.mxu0 0.0
    %923 = vmatpush1.msra.mxu0 0.0
    %924 = vmatprep.mubr.f32.mxu0 0.0
    %925 = vmatmul.mubr.f32.gmra.mrb[0].mxu0 %v858
    %v926 = vpop.f32.mrb[0].mxu0
    %v927 = vadd.f32 0.0, %v926
    %v928 = vpop.f32.mrb[0].mxu0
    %929 = vdwg.mxu0
    %v938 = vrot.slane %v805, 7
    %v939 = vsel %vm106, %v938, %v804
    %v940 = vrot.slane %v806, 6
    %v941 = vsel %vm109, %v940, %v939
    %v942 = vrot.slane %v807, 5
    %v943 = vsel %vm112, %v942, %v941
    %v944 = vrot.slane %v808, 4
    %v945 = vsel %vm115, %v944, %v943
    %v946 = vrot.slane %v809, 3
    %v947 = vsel %vm118, %v946, %v945
    %v948 = vrot.slane %v810, 2
    %v949 = vsel %vm121, %v948, %v947
    %v950 = vrot.slane %v811, 1
    %v951 = vsel %vm124, %v950, %v949
    %v952 = vsel %vm127, %v951, 0
    %954 = vmatprep.subr.mxu0 0.0
    %955 = vmatpush1.msra.mxu0 %v64
    %956 = vmatprep.subr.mxu0 0.0
    %957 = vmatpush1.msra.mxu0 %v65
    %958 = vmatprep.subr.mxu0 0.0
    %959 = vmatpush1.msra.mxu0 %v66
    %960 = vmatprep.subr.mxu0 0.0
    %961 = vmatpush1.msra.mxu0 %v67
    %962 = vmatprep.subr.mxu0 0.0
    %963 = vmatpush1.msra.mxu0 %v68
    %964 = vmatprep.subr.mxu0 0.0
    %965 = vmatpush1.msra.mxu0 %v69
    %966 = vmatprep.subr.mxu0 0.0
    %967 = vmatpush1.msra.mxu0 %v70
    %968 = vmatprep.subr.mxu0 0.0
    %969 = vmatpush1.msra.mxu0 %v71
    %970 = vmatprep.subr.mxu0 0.0
    %971 = vmatpush1.msra.mxu0 0.0
    %972 = vmatprep.subr.mxu0 0.0
    %973 = vmatpush1.msra.mxu0 0.0
    %974 = vmatprep.subr.mxu0 0.0
    %975 = vmatpush1.msra.mxu0 0.0
    %976 = vmatprep.subr.mxu0 0.0
    %977 = vmatpush1.msra.mxu0 0.0
    %978 = vmatprep.subr.mxu0 0.0
    %979 = vmatpush1.msra.mxu0 0.0
    %980 = vmatprep.subr.mxu0 0.0
    %981 = vmatpush1.msra.mxu0 0.0
    %982 = vmatprep.subr.mxu0 0.0
    %983 = vmatpush1.msra.mxu0 0.0
    %984 = vmatprep.subr.mxu0 0.0
    %985 = vmatpush1.msra.mxu0 0.0
    %986 = vmatprep.subr.mxu0 0.0
    %987 = vmatpush1.msra.mxu0 0.0
    %988 = vmatprep.subr.mxu0 0.0
    %989 = vmatpush1.msra.mxu0 0.0
    %990 = vmatprep.subr.mxu0 0.0
    %991 = vmatpush1.msra.mxu0 0.0
    %992 = vmatprep.subr.mxu0 0.0
    %993 = vmatpush1.msra.mxu0 0.0
    %994 = vmatprep.subr.mxu0 0.0
    %995 = vmatpush1.msra.mxu0 0.0
    %996 = vmatprep.subr.mxu0 0.0
    %997 = vmatpush1.msra.mxu0 0.0
    %998 = vmatprep.subr.mxu0 0.0
    %999 = vmatpush1.msra.mxu0 0.0
    %1000 = vmatprep.subr.mxu0 0.0
    %1001 = vmatpush1.msra.mxu0 0.0
    %1002 = vmatprep.subr.mxu0 0.0
    %1003 = vmatpush1.msra.mxu0 0.0
    %1004 = vmatprep.subr.mxu0 0.0
    %1005 = vmatpush1.msra.mxu0 0.0
    %1006 = vmatprep.subr.mxu0 0.0
    %1007 = vmatpush1.msra.mxu0 0.0
    %1008 = vmatprep.subr.mxu0 0.0
    %1009 = vmatpush1.msra.mxu0 0.0
    %1010 = vmatprep.subr.mxu0 0.0
    %1011 = vmatpush1.msra.mxu0 0.0
    %1012 = vmatprep.subr.mxu0 0.0
    %1013 = vmatpush1.msra.mxu0 0.0
    %1014 = vmatprep.subr.mxu0 0.0
    %1015 = vmatpush1.msra.mxu0 0.0
    %1016 = vmatprep.subr.mxu0 0.0
    %1017 = vmatpush1.msra.mxu0 0.0
    %1018 = vmatprep.mubr.f32.mxu0 0.0
    %1019 = vmatmul.mubr.f32.gmra.mrb[0].mxu0 %v952
    %v1020 = vpop.f32.mrb[0].mxu0
    %v1021 = vadd.f32 %v927, %v1020
    %v1022 = vpop.f32.mrb[0].mxu0
    %1023 = vdwg.mxu0
    %v1025 = vcombine.high %v1021, %v1021
    %v1027 = vunpack.c.l.s4 1966171168
    %v1028 = vunpack.c.0.s8 %v1027
    %v1029 = vlaneseq
    %v1030 = vshrl.u32 %v1029, 7
    %v1031 = vsub.s32 %v1028, %v1030
    %v1032 = vrot.slane %v1021, %v1031
    %v1034 = vunpack.c.l.s4 1966171168
    %v1035 = vunpack.c.0.s8 %v1034
    %v1036 = vlaneseq
    %v1037 = vshrl.u32 %v1036, 7
    %v1038 = vsub.s32 %v1035, %v1037
    %v1039 = vrot.slane %v1025, %v1038
    %v1040 = vcombine.high %v1032, %v1032
    %v1041 = vcombine.high %v1039, %v1039
    %v1043 = vunpack.c.l.s4 1966171168
    %v1044 = vunpack.c.0.s8 %v1043
    %v1045 = vlaneseq
    %v1046 = vshrl.u32 %v1045, 7
    %v1047 = vsub.s32 %v1044, %v1046
    %v1048 = vrot.slane %v1032, %v1047
    %v1050 = vunpack.c.l.s4 1966171168
    %v1051 = vunpack.c.0.s8 %v1050
    %v1052 = vlaneseq
    %v1053 = vshrl.u32 %v1052, 7
    %v1054 = vsub.s32 %v1051, %v1053
    %v1055 = vrot.slane %v1039, %v1054
    %v1057 = vunpack.c.l.s4 1966171168
    %v1058 = vunpack.c.0.s8 %v1057
    %v1059 = vlaneseq
    %v1060 = vshrl.u32 %v1059, 7
    %v1061 = vsub.s32 %v1058, %v1060
    %v1062 = vrot.slane %v1040, %v1061
    %v1064 = vunpack.c.l.s4 1966171168
    %v1065 = vunpack.c.0.s8 %v1064
    %v1066 = vlaneseq
    %v1067 = vshrl.u32 %v1066, 7
    %v1068 = vsub.s32 %v1065, %v1067
    %v1069 = vrot.slane %v1041, %v1068
    %v1070 = vcombine.high %v1048, %v1048
    %v1071 = vcombine.high %v1055, %v1055
    %v1072 = vcombine.high %v1062, %v1062
    %v1073 = vcombine.high %v1069, %v1069
    %1082 = vst.msk [vmem:[#allocation8 + $0x1] sm:$0x1] %vm589, %v1048
    %1083 = vst.msk [vmem:[#allocation8 + $0x5] sm:$0x1] %vm589, %v1062
    %1084 = vst.msk [vmem:[#allocation8 + $0x9] sm:$0x1] %vm589, %v1070
    %1085 = vst.msk [vmem:[#allocation8 + $0xd] sm:$0x1] %vm589, %v1072
    %1086 = vst.msk [vmem:[#allocation8 + $0x11] sm:$0x1] %vm589, %v1055
    %1087 = vst.msk [vmem:[#allocation8 + $0x15] sm:$0x1] %vm589, %v1069
    %1088 = vst.msk [vmem:[#allocation8 + $0x19] sm:$0x1] %vm589, %v1071
    %1089 = vst.msk [vmem:[#allocation8 + $0x1d] sm:$0x1] %vm589, %v1073
    %v1090 = vld [vmem:[#allocation2 + $0x2] sm:$0x1]
    %v1091 = vld [vmem:[#allocation2 + $0xa] sm:$0x1]
    %v1092 = vld [vmem:[#allocation2 + $0x12] sm:$0x1]
    %v1093 = vld [vmem:[#allocation2 + $0x1a] sm:$0x1]
    %v1094 = vld [vmem:[#allocation2 + $0x22] sm:$0x1]
    %v1095 = vld [vmem:[#allocation2 + $0x2a] sm:$0x1]
    %v1096 = vld [vmem:[#allocation2 + $0x32] sm:$0x1]
    %v1097 = vld [vmem:[#allocation2 + $0x3a] sm:$0x1]
    %v1098 = vld [vmem:[%s88 + $0x2] sm:$0x1]
    %v1099 = vld [vmem:[%s88 + $0xa] sm:$0x1]
    %v1100 = vld [vmem:[%s88 + $0x12] sm:$0x1]
    %v1101 = vld [vmem:[%s88 + $0x1a] sm:$0x1]
    %v1102 = vld [vmem:[%s88 + $0x22] sm:$0x1]
    %v1103 = vld [vmem:[%s88 + $0x2a] sm:$0x1]
    %v1104 = vld [vmem:[%s88 + $0x32] sm:$0x1]
    %v1105 = vld [vmem:[%s88 + $0x3a] sm:$0x1]
    %v1114 = vrot.slane %v1091, 7
    %v1115 = vsel %vm106, %v1114, %v1090
    %v1116 = vrot.slane %v1092, 6
    %v1117 = vsel %vm109, %v1116, %v1115
    %v1118 = vrot.slane %v1093, 5
    %v1119 = vsel %vm112, %v1118, %v1117
    %v1120 = vrot.slane %v1094, 4
    %v1121 = vsel %vm115, %v1120, %v1119
    %v1122 = vrot.slane %v1095, 3
    %v1123 = vsel %vm118, %v1122, %v1121
    %v1124 = vrot.slane %v1096, 2
    %v1125 = vsel %vm121, %v1124, %v1123
    %v1126 = vrot.slane %v1097, 1
    %v1127 = vsel %vm124, %v1126, %v1125
    %v1129 = vsel %vm127, %v1127, 0.0
    %1130 = vadd.xlane.f32.xlu0 %v1129
    %v1131 = vpop.xlane.xlu0 %1130
    %v1140 = vrot.slane %v1099, 7
    %v1141 = vsel %vm106, %v1140, %v1098
    %v1142 = vrot.slane %v1100, 6
    %v1143 = vsel %vm109, %v1142, %v1141
    %v1144 = vrot.slane %v1101, 5
    %v1145 = vsel %vm112, %v1144, %v1143
    %v1146 = vrot.slane %v1102, 4
    %v1147 = vsel %vm115, %v1146, %v1145
    %v1148 = vrot.slane %v1103, 3
    %v1149 = vsel %vm118, %v1148, %v1147
    %v1150 = vrot.slane %v1104, 2
    %v1151 = vsel %vm121, %v1150, %v1149
    %v1152 = vrot.slane %v1105, 1
    %v1153 = vsel %vm124, %v1152, %v1151
    %v1155 = vsel %vm127, %v1153, 0.0
    %1156 = vadd.xlane.f32.xlu0 %v1155
    %v1157 = vpop.xlane.xlu0 %1156
    %v1158 = vadd.f32 %v1131, %v1157
    %v1159 = vmul.f32 %v1158, 0.0078125
    %v1161 = vrot.slane %v1159, 1
    %v1162 = vrot.slane %v1159, 2
    %v1163 = vrot.slane %v1159, 3
    %v1164 = vrot.slane %v1159, 4
    %v1165 = vrot.slane %v1159, 5
    %v1166 = vrot.slane %v1159, 6
    %v1167 = vrot.slane %v1159, 7
    %v1176 = vsub.f32 %v1090, %v1159
    %v1177 = vsub.f32 %v1091, %v1161
    %v1178 = vsub.f32 %v1092, %v1162
    %v1179 = vsub.f32 %v1093, %v1163
    %v1180 = vsub.f32 %v1094, %v1164
    %v1181 = vsub.f32 %v1095, %v1165
    %v1182 = vsub.f32 %v1096, %v1166
    %v1183 = vsub.f32 %v1097, %v1167
    %v1184 = vsub.f32 %v1098, %v1159
    %v1185 = vsub.f32 %v1099, %v1161
    %v1186 = vsub.f32 %v1100, %v1162
    %v1187 = vsub.f32 %v1101, %v1163
    %v1188 = vsub.f32 %v1102, %v1164
    %v1189 = vsub.f32 %v1103, %v1165
    %v1190 = vsub.f32 %v1104, %v1166
    %v1191 = vsub.f32 %v1105, %v1167
    %v1192 = vmul.f32 %v1176, %v1176
    %v1193 = vmul.f32 %v1177, %v1177
    %v1194 = vmul.f32 %v1178, %v1178
    %v1195 = vmul.f32 %v1179, %v1179
    %v1196 = vmul.f32 %v1180, %v1180
    %v1197 = vmul.f32 %v1181, %v1181
    %v1198 = vmul.f32 %v1182, %v1182
    %v1199 = vmul.f32 %v1183, %v1183
    %v1208 = vrot.slane %v1193, 7
    %v1209 = vsel %vm106, %v1208, %v1192
    %v1210 = vrot.slane %v1194, 6
    %v1211 = vsel %vm109, %v1210, %v1209
    %v1212 = vrot.slane %v1195, 5
    %v1213 = vsel %vm112, %v1212, %v1211
    %v1214 = vrot.slane %v1196, 4
    %v1215 = vsel %vm115, %v1214, %v1213
    %v1216 = vrot.slane %v1197, 3
    %v1217 = vsel %vm118, %v1216, %v1215
    %v1218 = vrot.slane %v1198, 2
    %v1219 = vsel %vm121, %v1218, %v1217
    %v1220 = vrot.slane %v1199, 1
    %v1221 = vsel %vm124, %v1220, %v1219
    %v1223 = vsel %vm127, %v1221, 0.0
    %1224 = vadd.xlane.f32.xlu0 %v1223
    %v1225 = vpop.xlane.xlu0 %1224
    %v1226 = vmul.f32 %v1184, %v1184
    %v1227 = vmul.f32 %v1185, %v1185
    %v1228 = vmul.f32 %v1186, %v1186
    %v1229 = vmul.f32 %v1187, %v1187
    %v1230 = vmul.f32 %v1188, %v1188
    %v1231 = vmul.f32 %v1189, %v1189
    %v1232 = vmul.f32 %v1190, %v1190
    %v1233 = vmul.f32 %v1191, %v1191
    %v1242 = vrot.slane %v1227, 7
    %v1243 = vsel %vm106, %v1242, %v1226
    %v1244 = vrot.slane %v1228, 6
    %v1245 = vsel %vm109, %v1244, %v1243
    %v1246 = vrot.slane %v1229, 5
    %v1247 = vsel %vm112, %v1246, %v1245
    %v1248 = vrot.slane %v1230, 4
    %v1249 = vsel %vm115, %v1248, %v1247
    %v1250 = vrot.slane %v1231, 3
    %v1251 = vsel %vm118, %v1250, %v1249
    %v1252 = vrot.slane %v1232, 2
    %v1253 = vsel %vm121, %v1252, %v1251
    %v1254 = vrot.slane %v1233, 1
    %v1255 = vsel %vm124, %v1254, %v1253
    %v1257 = vsel %vm127, %v1255, 0.0
    %1258 = vadd.xlane.f32.xlu0 %v1257
    %v1259 = vpop.xlane.xlu0 %1258
    %v1260 = vadd.f32 %v1225, %v1259
    %v1261 = vmul.f32 %v1260, 0.0078125
    %v1262 = vadd.f32 %v1261, 1e-05
    %v1263 = vrsqrt.pop %v1262
    %v1265 = vrot.slane %v1263, 1
    %v1266 = vrot.slane %v1263, 2
    %v1267 = vrot.slane %v1263, 3
    %v1268 = vrot.slane %v1263, 4
    %v1269 = vrot.slane %v1263, 5
    %v1270 = vrot.slane %v1263, 6
    %v1271 = vrot.slane %v1263, 7
    %v1280 = vmul.f32 %v1176, %v1263
    %v1281 = vmul.f32 %v1177, %v1265
    %v1282 = vmul.f32 %v1178, %v1266
    %v1283 = vmul.f32 %v1179, %v1267
    %v1284 = vmul.f32 %v1180, %v1268
    %v1285 = vmul.f32 %v1181, %v1269
    %v1286 = vmul.f32 %v1182, %v1270
    %v1287 = vmul.f32 %v1183, %v1271
    %v1288 = vmul.f32 %v1280, %v290
    %v1289 = vmul.f32 %v1281, %v290
    %v1290 = vmul.f32 %v1282, %v290
    %v1291 = vmul.f32 %v1283, %v290
    %v1292 = vmul.f32 %v1284, %v290
    %v1293 = vmul.f32 %v1285, %v290
    %v1294 = vmul.f32 %v1286, %v290
    %v1295 = vmul.f32 %v1287, %v290
    %v1296 = vadd.f32 %v1288, %v302
    %v1297 = vadd.f32 %v1289, %v302
    %v1298 = vadd.f32 %v1290, %v302
    %v1299 = vadd.f32 %v1291, %v302
    %v1300 = vadd.f32 %v1292, %v302
    %v1301 = vadd.f32 %v1293, %v302
    %v1302 = vadd.f32 %v1294, %v302
    %v1303 = vadd.f32 %v1295, %v302
    %v1304 = vmul.f32 %v1184, %v1263
    %v1305 = vmul.f32 %v1185, %v1265
    %v1306 = vmul.f32 %v1186, %v1266
    %v1307 = vmul.f32 %v1187, %v1267
    %v1308 = vmul.f32 %v1188, %v1268
    %v1309 = vmul.f32 %v1189, %v1269
    %v1310 = vmul.f32 %v1190, %v1270
    %v1311 = vmul.f32 %v1191, %v1271
    %v1312 = vmul.f32 %v1304, %v322
    %v1313 = vmul.f32 %v1305, %v322
    %v1314 = vmul.f32 %v1306, %v322
    %v1315 = vmul.f32 %v1307, %v322
    %v1316 = vmul.f32 %v1308, %v322
    %v1317 = vmul.f32 %v1309, %v322
    %v1318 = vmul.f32 %v1310, %v322
    %v1319 = vmul.f32 %v1311, %v322
    %v1320 = vadd.f32 %v1312, %v334
    %v1321 = vadd.f32 %v1313, %v334
    %v1322 = vadd.f32 %v1314, %v334
    %v1323 = vadd.f32 %v1315, %v334
    %v1324 = vadd.f32 %v1316, %v334
    %v1325 = vadd.f32 %v1317, %v334
    %v1326 = vadd.f32 %v1318, %v334
    %v1327 = vadd.f32 %v1319, %v334
    %v1336 = vrot.slane %v1321, 7
    %v1337 = vsel %vm106, %v1336, %v1320
    %v1338 = vrot.slane %v1322, 6
    %v1339 = vsel %vm109, %v1338, %v1337
    %v1340 = vrot.slane %v1323, 5
    %v1341 = vsel %vm112, %v1340, %v1339
    %v1342 = vrot.slane %v1324, 4
    %v1343 = vsel %vm115, %v1342, %v1341
    %v1344 = vrot.slane %v1325, 3
    %v1345 = vsel %vm118, %v1344, %v1343
    %v1346 = vrot.slane %v1326, 2
    %v1347 = vsel %vm121, %v1346, %v1345
    %v1348 = vrot.slane %v1327, 1
    %v1349 = vsel %vm124, %v1348, %v1347
    %v1350 = vsel %vm127, %v1349, 0
    %1352 = vmatprep.subr.mxu0 0.0
    %1353 = vmatpush1.msra.mxu0 %v72
    %1354 = vmatprep.subr.mxu0 0.0
    %1355 = vmatpush1.msra.mxu0 %v73
    %1356 = vmatprep.subr.mxu0 0.0
    %1357 = vmatpush1.msra.mxu0 %v74
    %1358 = vmatprep.subr.mxu0 0.0
    %1359 = vmatpush1.msra.mxu0 %v75
    %1360 = vmatprep.subr.mxu0 0.0
    %1361 = vmatpush1.msra.mxu0 %v76
    %1362 = vmatprep.subr.mxu0 0.0
    %1363 = vmatpush1.msra.mxu0 %v77
    %1364 = vmatprep.subr.mxu0 0.0
    %1365 = vmatpush1.msra.mxu0 %v78
    %1366 = vmatprep.subr.mxu0 0.0
    %1367 = vmatpush1.msra.mxu0 %v79
    %1368 = vmatprep.subr.mxu0 0.0
    %1369 = vmatpush1.msra.mxu0 0.0
    %1370 = vmatprep.subr.mxu0 0.0
    %1371 = vmatpush1.msra.mxu0 0.0
    %1372 = vmatprep.subr.mxu0 0.0
    %1373 = vmatpush1.msra.mxu0 0.0
    %1374 = vmatprep.subr.mxu0 0.0
    %1375 = vmatpush1.msra.mxu0 0.0
    %1376 = vmatprep.subr.mxu0 0.0
    %1377 = vmatpush1.msra.mxu0 0.0
    %1378 = vmatprep.subr.mxu0 0.0
    %1379 = vmatpush1.msra.mxu0 0.0
    %1380 = vmatprep.subr.mxu0 0.0
    %1381 = vmatpush1.msra.mxu0 0.0
    %1382 = vmatprep.subr.mxu0 0.0
    %1383 = vmatpush1.msra.mxu0 0.0
    %1384 = vmatprep.subr.mxu0 0.0
    %1385 = vmatpush1.msra.mxu0 0.0
    %1386 = vmatprep.subr.mxu0 0.0
    %1387 = vmatpush1.msra.mxu0 0.0
    %1388 = vmatprep.subr.mxu0 0.0
    %1389 = vmatpush1.msra.mxu0 0.0
    %1390 = vmatprep.subr.mxu0 0.0
    %1391 = vmatpush1.msra.mxu0 0.0
    %1392 = vmatprep.subr.mxu0 0.0
    %1393 = vmatpush1.msra.mxu0 0.0
    %1394 = vmatprep.subr.mxu0 0.0
    %1395 = vmatpush1.msra.mxu0 0.0
    %1396 = vmatprep.subr.mxu0 0.0
    %1397 = vmatpush1.msra.mxu0 0.0
    %1398 = vmatprep.subr.mxu0 0.0
    %1399 = vmatpush1.msra.mxu0 0.0
    %1400 = vmatprep.subr.mxu0 0.0
    %1401 = vmatpush1.msra.mxu0 0.0
    %1402 = vmatprep.subr.mxu0 0.0
    %1403 = vmatpush1.msra.mxu0 0.0
    %1404 = vmatprep.subr.mxu0 0.0
    %1405 = vmatpush1.msra.mxu0 0.0
    %1406 = vmatprep.subr.mxu0 0.0
    %1407 = vmatpush1.msra.mxu0 0.0
    %1408 = vmatprep.subr.mxu0 0.0
    %1409 = vmatpush1.msra.mxu0 0.0
    %1410 = vmatprep.subr.mxu0 0.0
    %1411 = vmatpush1.msra.mxu0 0.0
    %1412 = vmatprep.subr.mxu0 0.0
    %1413 = vmatpush1.msra.mxu0 0.0
    %1414 = vmatprep.subr.mxu0 0.0
    %1415 = vmatpush1.msra.mxu0 0.0
    %1416 = vmatprep.mubr.f32.mxu0 0.0
    %1417 = vmatmul.mubr.f32.gmra.mrb[0].mxu0 %v1350
    %v1418 = vpop.f32.mrb[0].mxu0
    %v1419 = vadd.f32 0.0, %v1418
    %v1420 = vpop.f32.mrb[0].mxu0
    %1421 = vdwg.mxu0
    %v1430 = vrot.slane %v1297, 7
    %v1431 = vsel %vm106, %v1430, %v1296
    %v1432 = vrot.slane %v1298, 6
    %v1433 = vsel %vm109, %v1432, %v1431
    %v1434 = vrot.slane %v1299, 5
    %v1435 = vsel %vm112, %v1434, %v1433
    %v1436 = vrot.slane %v1300, 4
    %v1437 = vsel %vm115, %v1436, %v1435
    %v1438 = vrot.slane %v1301, 3
    %v1439 = vsel %vm118, %v1438, %v1437
    %v1440 = vrot.slane %v1302, 2
    %v1441 = vsel %vm121, %v1440, %v1439
    %v1442 = vrot.slane %v1303, 1
    %v1443 = vsel %vm124, %v1442, %v1441
    %v1444 = vsel %vm127, %v1443, 0
    %1446 = vmatprep.subr.mxu0 0.0
    %1447 = vmatpush1.msra.mxu0 %v64
    %1448 = vmatprep.subr.mxu0 0.0
    %1449 = vmatpush1.msra.mxu0 %v65
    %1450 = vmatprep.subr.mxu0 0.0
    %1451 = vmatpush1.msra.mxu0 %v66
    %1452 = vmatprep.subr.mxu0 0.0
    %1453 = vmatpush1.msra.mxu0 %v67
    %1454 = vmatprep.subr.mxu0 0.0
    %1455 = vmatpush1.msra.mxu0 %v68
    %1456 = vmatprep.subr.mxu0 0.0
    %1457 = vmatpush1.msra.mxu0 %v69
    %1458 = vmatprep.subr.mxu0 0.0
    %1459 = vmatpush1.msra.mxu0 %v70
    %1460 = vmatprep.subr.mxu0 0.0
    %1461 = vmatpush1.msra.mxu0 %v71
    %1462 = vmatprep.subr.mxu0 0.0
    %1463 = vmatpush1.msra.mxu0 0.0
    %1464 = vmatprep.subr.mxu0 0.0
    %1465 = vmatpush1.msra.mxu0 0.0
    %1466 = vmatprep.subr.mxu0 0.0
    %1467 = vmatpush1.msra.mxu0 0.0
    %1468 = vmatprep.subr.mxu0 0.0
    %1469 = vmatpush1.msra.mxu0 0.0
    %1470 = vmatprep.subr.mxu0 0.0
    %1471 = vmatpush1.msra.mxu0 0.0
    %1472 = vmatprep.subr.mxu0 0.0
    %1473 = vmatpush1.msra.mxu0 0.0
    %1474 = vmatprep.subr.mxu0 0.0
    %1475 = vmatpush1.msra.mxu0 0.0
    %1476 = vmatprep.subr.mxu0 0.0
    %1477 = vmatpush1.msra.mxu0 0.0
    %1478 = vmatprep.subr.mxu0 0.0
    %1479 = vmatpush1.msra.mxu0 0.0
    %1480 = vmatprep.subr.mxu0 0.0
    %1481 = vmatpush1.msra.mxu0 0.0
    %1482 = vmatprep.subr.mxu0 0.0
    %1483 = vmatpush1.msra.mxu0 0.0
    %1484 = vmatprep.subr.mxu0 0.0
    %1485 = vmatpush1.msra.mxu0 0.0
    %1486 = vmatprep.subr.mxu0 0.0
    %1487 = vmatpush1.msra.mxu0 0.0
    %1488 = vmatprep.subr.mxu0 0.0
    %1489 = vmatpush1.msra.mxu0 0.0
    %1490 = vmatprep.subr.mxu0 0.0
    %1491 = vmatpush1.msra.mxu0 0.0
    %1492 = vmatprep.subr.mxu0 0.0
    %1493 = vmatpush1.msra.mxu0 0.0
    %1494 = vmatprep.subr.mxu0 0.0
    %1495 = vmatpush1.msra.mxu0 0.0
    %1496 = vmatprep.subr.mxu0 0.0
    %1497 = vmatpush1.msra.mxu0 0.0
    %1498 = vmatprep.subr.mxu0 0.0
    %1499 = vmatpush1.msra.mxu0 0.0
    %1500 = vmatprep.subr.mxu0 0.0
    %1501 = vmatpush1.msra.mxu0 0.0
    %1502 = vmatprep.subr.mxu0 0.0
    %1503 = vmatpush1.msra.mxu0 0.0
    %1504 = vmatprep.subr.mxu0 0.0
    %1505 = vmatpush1.msra.mxu0 0.0
    %1506 = vmatprep.subr.mxu0 0.0
    %1507 = vmatpush1.msra.mxu0 0.0
    %1508 = vmatprep.subr.mxu0 0.0
    %1509 = vmatpush1.msra.mxu0 0.0
    %1510 = vmatprep.mubr.f32.mxu0 0.0
    %1511 = vmatmul.mubr.f32.gmra.mrb[0].mxu0 %v1444
    %v1512 = vpop.f32.mrb[0].mxu0
    %v1513 = vadd.f32 %v1419, %v1512
    %v1514 = vpop.f32.mrb[0].mxu0
    %1515 = vdwg.mxu0
    %v1517 = vcombine.high %v1513, %v1513
    %v1519 = vunpack.c.l.s4 1966171168
    %v1520 = vunpack.c.0.s8 %v1519
    %v1521 = vlaneseq
    %v1522 = vshrl.u32 %v1521, 7
    %v1523 = vsub.s32 %v1520, %v1522
    %v1524 = vrot.slane %v1513, %v1523
    %v1526 = vunpack.c.l.s4 1966171168
    %v1527 = vunpack.c.0.s8 %v1526
    %v1528 = vlaneseq
    %v1529 = vshrl.u32 %v1528, 7
    %v1530 = vsub.s32 %v1527, %v1529
    %v1531 = vrot.slane %v1517, %v1530
    %v1532 = vcombine.high %v1524, %v1524
    %v1533 = vcombine.high %v1531, %v1531
    %v1535 = vunpack.c.l.s4 1966171168
    %v1536 = vunpack.c.0.s8 %v1535
    %v1537 = vlaneseq
    %v1538 = vshrl.u32 %v1537, 7
    %v1539 = vsub.s32 %v1536, %v1538
    %v1540 = vrot.slane %v1524, %v1539
    %v1542 = vunpack.c.l.s4 1966171168
    %v1543 = vunpack.c.0.s8 %v1542
    %v1544 = vlaneseq
    %v1545 = vshrl.u32 %v1544, 7
    %v1546 = vsub.s32 %v1543, %v1545
    %v1547 = vrot.slane %v1531, %v1546
    %v1549 = vunpack.c.l.s4 1966171168
    %v1550 = vunpack.c.0.s8 %v1549
    %v1551 = vlaneseq
    %v1552 = vshrl.u32 %v1551, 7
    %v1553 = vsub.s32 %v1550, %v1552
    %v1554 = vrot.slane %v1532, %v1553
    %v1556 = vunpack.c.l.s4 1966171168
    %v1557 = vunpack.c.0.s8 %v1556
    %v1558 = vlaneseq
    %v1559 = vshrl.u32 %v1558, 7
    %v1560 = vsub.s32 %v1557, %v1559
    %v1561 = vrot.slane %v1533, %v1560
    %v1562 = vcombine.high %v1540, %v1540
    %v1563 = vcombine.high %v1547, %v1547
    %v1564 = vcombine.high %v1554, %v1554
    %v1565 = vcombine.high %v1561, %v1561
    %1574 = vst.msk [vmem:[#allocation8 + $0x2] sm:$0x1] %vm589, %v1540
    %1575 = vst.msk [vmem:[#allocation8 + $0x6] sm:$0x1] %vm589, %v1554
    %1576 = vst.msk [vmem:[#allocation8 + $0xa] sm:$0x1] %vm589, %v1562
    %1577 = vst.msk [vmem:[#allocation8 + $0xe] sm:$0x1] %vm589, %v1564
    %1578 = vst.msk [vmem:[#allocation8 + $0x12] sm:$0x1] %vm589, %v1547
    %1579 = vst.msk [vmem:[#allocation8 + $0x16] sm:$0x1] %vm589, %v1561
    %1580 = vst.msk [vmem:[#allocation8 + $0x1a] sm:$0x1] %vm589, %v1563
    %1581 = vst.msk [vmem:[#allocation8 + $0x1e] sm:$0x1] %vm589, %v1565
    %v1582 = vld [vmem:[#allocation2 + $0x3] sm:$0x1]
    %v1583 = vld [vmem:[#allocation2 + $0xb] sm:$0x1]
    %v1584 = vld [vmem:[#allocation2 + $0x13] sm:$0x1]
    %v1585 = vld [vmem:[#allocation2 + $0x1b] sm:$0x1]
    %v1586 = vld [vmem:[#allocation2 + $0x23] sm:$0x1]
    %v1587 = vld [vmem:[#allocation2 + $0x2b] sm:$0x1]
    %v1588 = vld [vmem:[#allocation2 + $0x33] sm:$0x1]
    %v1589 = vld [vmem:[#allocation2 + $0x3b] sm:$0x1]
    %v1590 = vld [vmem:[%s88 + $0x3] sm:$0x1]
    %v1591 = vld [vmem:[%s88 + $0xb] sm:$0x1]
    %v1592 = vld [vmem:[%s88 + $0x13] sm:$0x1]
    %v1593 = vld [vmem:[%s88 + $0x1b] sm:$0x1]
    %v1594 = vld [vmem:[%s88 + $0x23] sm:$0x1]
    %v1595 = vld [vmem:[%s88 + $0x2b] sm:$0x1]
    %v1596 = vld [vmem:[%s88 + $0x33] sm:$0x1]
    %v1597 = vld [vmem:[%s88 + $0x3b] sm:$0x1]
    %v1606 = vrot.slane %v1583, 7
    %v1607 = vsel %vm106, %v1606, %v1582
    %v1608 = vrot.slane %v1584, 6
    %v1609 = vsel %vm109, %v1608, %v1607
    %v1610 = vrot.slane %v1585, 5
    %v1611 = vsel %vm112, %v1610, %v1609
    %v1612 = vrot.slane %v1586, 4
    %v1613 = vsel %vm115, %v1612, %v1611
    %v1614 = vrot.slane %v1587, 3
    %v1615 = vsel %vm118, %v1614, %v1613
    %v1616 = vrot.slane %v1588, 2
    %v1617 = vsel %vm121, %v1616, %v1615
    %v1618 = vrot.slane %v1589, 1
    %v1619 = vsel %vm124, %v1618, %v1617
    %v1621 = vsel %vm127, %v1619, 0.0
    %1622 = vadd.xlane.f32.xlu0 %v1621
    %v1623 = vpop.xlane.xlu0 %1622
    %v1632 = vrot.slane %v1591, 7
    %v1633 = vsel %vm106, %v1632, %v1590
    %v1634 = vrot.slane %v1592, 6
    %v1635 = vsel %vm109, %v1634, %v1633
    %v1636 = vrot.slane %v1593, 5
    %v1637 = vsel %vm112, %v1636, %v1635
    %v1638 = vrot.slane %v1594, 4
    %v1639 = vsel %vm115, %v1638, %v1637
    %v1640 = vrot.slane %v1595, 3
    %v1641 = vsel %vm118, %v1640, %v1639
    %v1642 = vrot.slane %v1596, 2
    %v1643 = vsel %vm121, %v1642, %v1641
    %v1644 = vrot.slane %v1597, 1
    %v1645 = vsel %vm124, %v1644, %v1643
    %v1647 = vsel %vm127, %v1645, 0.0
    %1648 = vadd.xlane.f32.xlu0 %v1647
    %v1649 = vpop.xlane.xlu0 %1648
    %v1650 = vadd.f32 %v1623, %v1649
    %v1651 = vmul.f32 %v1650, 0.0078125
    %v1653 = vrot.slane %v1651, 1
    %v1654 = vrot.slane %v1651, 2
    %v1655 = vrot.slane %v1651, 3
    %v1656 = vrot.slane %v1651, 4
    %v1657 = vrot.slane %v1651, 5
    %v1658 = vrot.slane %v1651, 6
    %v1659 = vrot.slane %v1651, 7
    %v1668 = vsub.f32 %v1582, %v1651
    %v1669 = vsub.f32 %v1583, %v1653
    %v1670 = vsub.f32 %v1584, %v1654
    %v1671 = vsub.f32 %v1585, %v1655
    %v1672 = vsub.f32 %v1586, %v1656
    %v1673 = vsub.f32 %v1587, %v1657
    %v1674 = vsub.f32 %v1588, %v1658
    %v1675 = vsub.f32 %v1589, %v1659
    %v1676 = vsub.f32 %v1590, %v1651
    %v1677 = vsub.f32 %v1591, %v1653
    %v1678 = vsub.f32 %v1592, %v1654
    %v1679 = vsub.f32 %v1593, %v1655
    %v1680 = vsub.f32 %v1594, %v1656
    %v1681 = vsub.f32 %v1595, %v1657
    %v1682 = vsub.f32 %v1596, %v1658
    %v1683 = vsub.f32 %v1597, %v1659
    %v1684 = vmul.f32 %v1668, %v1668
    %v1685 = vmul.f32 %v1669, %v1669
    %v1686 = vmul.f32 %v1670, %v1670
    %v1687 = vmul.f32 %v1671, %v1671
    %v1688 = vmul.f32 %v1672, %v1672
    %v1689 = vmul.f32 %v1673, %v1673
    %v1690 = vmul.f32 %v1674, %v1674
    %v1691 = vmul.f32 %v1675, %v1675
    %v1700 = vrot.slane %v1685, 7
    %v1701 = vsel %vm106, %v1700, %v1684
    %v1702 = vrot.slane %v1686, 6
    %v1703 = vsel %vm109, %v1702, %v1701
    %v1704 = vrot.slane %v1687, 5
    %v1705 = vsel %vm112, %v1704, %v1703
    %v1706 = vrot.slane %v1688, 4
    %v1707 = vsel %vm115, %v1706, %v1705
    %v1708 = vrot.slane %v1689, 3
    %v1709 = vsel %vm118, %v1708, %v1707
    %v1710 = vrot.slane %v1690, 2
    %v1711 = vsel %vm121, %v1710, %v1709
    %v1712 = vrot.slane %v1691, 1
    %v1713 = vsel %vm124, %v1712, %v1711
    %v1715 = vsel %vm127, %v1713, 0.0
    %1716 = vadd.xlane.f32.xlu0 %v1715
    %v1717 = vpop.xlane.xlu0 %1716
    %v1718 = vmul.f32 %v1676, %v1676
    %v1719 = vmul.f32 %v1677, %v1677
    %v1720 = vmul.f32 %v1678, %v1678
    %v1721 = vmul.f32 %v1679, %v1679
    %v1722 = vmul.f32 %v1680, %v1680
    %v1723 = vmul.f32 %v1681, %v1681
    %v1724 = vmul.f32 %v1682, %v1682
    %v1725 = vmul.f32 %v1683, %v1683
    %v1734 = vrot.slane %v1719, 7
    %v1735 = vsel %vm106, %v1734, %v1718
    %v1736 = vrot.slane %v1720, 6
    %v1737 = vsel %vm109, %v1736, %v1735
    %v1738 = vrot.slane %v1721, 5
    %v1739 = vsel %vm112, %v1738, %v1737
    %v1740 = vrot.slane %v1722, 4
    %v1741 = vsel %vm115, %v1740, %v1739
    %v1742 = vrot.slane %v1723, 3
    %v1743 = vsel %vm118, %v1742, %v1741
    %v1744 = vrot.slane %v1724, 2
    %v1745 = vsel %vm121, %v1744, %v1743
    %v1746 = vrot.slane %v1725, 1
    %v1747 = vsel %vm124, %v1746, %v1745
    %v1749 = vsel %vm127, %v1747, 0.0
    %1750 = vadd.xlane.f32.xlu0 %v1749
    %v1751 = vpop.xlane.xlu0 %1750
    %v1752 = vadd.f32 %v1717, %v1751
    %v1753 = vmul.f32 %v1752, 0.0078125
    %v1754 = vadd.f32 %v1753, 1e-05
    %v1755 = vrsqrt.pop %v1754
    %v1757 = vrot.slane %v1755, 1
    %v1758 = vrot.slane %v1755, 2
    %v1759 = vrot.slane %v1755, 3
    %v1760 = vrot.slane %v1755, 4
    %v1761 = vrot.slane %v1755, 5
    %v1762 = vrot.slane %v1755, 6
    %v1763 = vrot.slane %v1755, 7
    %v1772 = vmul.f32 %v1668, %v1755
    %v1773 = vmul.f32 %v1669, %v1757
    %v1774 = vmul.f32 %v1670, %v1758
    %v1775 = vmul.f32 %v1671, %v1759
    %v1776 = vmul.f32 %v1672, %v1760
    %v1777 = vmul.f32 %v1673, %v1761
    %v1778 = vmul.f32 %v1674, %v1762
    %v1779 = vmul.f32 %v1675, %v1763
    %v1780 = vmul.f32 %v1772, %v290
    %v1781 = vmul.f32 %v1773, %v290
    %v1782 = vmul.f32 %v1774, %v290
    %v1783 = vmul.f32 %v1775, %v290
    %v1784 = vmul.f32 %v1776, %v290
    %v1785 = vmul.f32 %v1777, %v290
    %v1786 = vmul.f32 %v1778, %v290
    %v1787 = vmul.f32 %v1779, %v290
    %v1788 = vadd.f32 %v1780, %v302
    %v1789 = vadd.f32 %v1781, %v302
    %v1790 = vadd.f32 %v1782, %v302
    %v1791 = vadd.f32 %v1783, %v302
    %v1792 = vadd.f32 %v1784, %v302
    %v1793 = vadd.f32 %v1785, %v302
    %v1794 = vadd.f32 %v1786, %v302
    %v1795 = vadd.f32 %v1787, %v302
    %v1796 = vmul.f32 %v1676, %v1755
    %v1797 = vmul.f32 %v1677, %v1757
    %v1798 = vmul.f32 %v1678, %v1758
    %v1799 = vmul.f32 %v1679, %v1759
    %v1800 = vmul.f32 %v1680, %v1760
    %v1801 = vmul.f32 %v1681, %v1761
    %v1802 = vmul.f32 %v1682, %v1762
    %v1803 = vmul.f32 %v1683, %v1763
    %v1804 = vmul.f32 %v1796, %v322
    %v1805 = vmul.f32 %v1797, %v322
    %v1806 = vmul.f32 %v1798, %v322
    %v1807 = vmul.f32 %v1799, %v322
    %v1808 = vmul.f32 %v1800, %v322
    %v1809 = vmul.f32 %v1801, %v322
    %v1810 = vmul.f32 %v1802, %v322
    %v1811 = vmul.f32 %v1803, %v322
    %v1812 = vadd.f32 %v1804, %v334
    %v1813 = vadd.f32 %v1805, %v334
    %v1814 = vadd.f32 %v1806, %v334
    %v1815 = vadd.f32 %v1807, %v334
    %v1816 = vadd.f32 %v1808, %v334
    %v1817 = vadd.f32 %v1809, %v334
    %v1818 = vadd.f32 %v1810, %v334
    %v1819 = vadd.f32 %v1811, %v334
    %v1828 = vrot.slane %v1813, 7
    %v1829 = vsel %vm106, %v1828, %v1812
    %v1830 = vrot.slane %v1814, 6
    %v1831 = vsel %vm109, %v1830, %v1829
    %v1832 = vrot.slane %v1815, 5
    %v1833 = vsel %vm112, %v1832, %v1831
    %v1834 = vrot.slane %v1816, 4
    %v1835 = vsel %vm115, %v1834, %v1833
    %v1836 = vrot.slane %v1817, 3
    %v1837 = vsel %vm118, %v1836, %v1835
    %v1838 = vrot.slane %v1818, 2
    %v1839 = vsel %vm121, %v1838, %v1837
    %v1840 = vrot.slane %v1819, 1
    %v1841 = vsel %vm124, %v1840, %v1839
    %v1842 = vsel %vm127, %v1841, 0
    %1844 = vmatprep.subr.mxu0 0.0
    %1845 = vmatpush1.msra.mxu0 %v72
    %1846 = vmatprep.subr.mxu0 0.0
    %1847 = vmatpush1.msra.mxu0 %v73
    %1848 = vmatprep.subr.mxu0 0.0
    %1849 = vmatpush1.msra.mxu0 %v74
    %1850 = vmatprep.subr.mxu0 0.0
    %1851 = vmatpush1.msra.mxu0 %v75
    %1852 = vmatprep.subr.mxu0 0.0
    %1853 = vmatpush1.msra.mxu0 %v76
    %1854 = vmatprep.subr.mxu0 0.0
    %1855 = vmatpush1.msra.mxu0 %v77
    %1856 = vmatprep.subr.mxu0 0.0
    %1857 = vmatpush1.msra.mxu0 %v78
    %1858 = vmatprep.subr.mxu0 0.0
    %1859 = vmatpush1.msra.mxu0 %v79
    %1860 = vmatprep.subr.mxu0 0.0
    %1861 = vmatpush1.msra.mxu0 0.0
    %1862 = vmatprep.subr.mxu0 0.0
    %1863 = vmatpush1.msra.mxu0 0.0
    %1864 = vmatprep.subr.mxu0 0.0
    %1865 = vmatpush1.msra.mxu0 0.0
    %1866 = vmatprep.subr.mxu0 0.0
    %1867 = vmatpush1.msra.mxu0 0.0
    %1868 = vmatprep.subr.mxu0 0.0
    %1869 = vmatpush1.msra.mxu0 0.0
    %1870 = vmatprep.subr.mxu0 0.0
    %1871 = vmatpush1.msra.mxu0 0.0
    %1872 = vmatprep.subr.mxu0 0.0
    %1873 = vmatpush1.msra.mxu0 0.0
    %1874 = vmatprep.subr.mxu0 0.0
    %1875 = vmatpush1.msra.mxu0 0.0
    %1876 = vmatprep.subr.mxu0 0.0
    %1877 = vmatpush1.msra.mxu0 0.0
    %1878 = vmatprep.subr.mxu0 0.0
    %1879 = vmatpush1.msra.mxu0 0.0
    %1880 = vmatprep.subr.mxu0 0.0
    %1881 = vmatpush1.msra.mxu0 0.0
    %1882 = vmatprep.subr.mxu0 0.0
    %1883 = vmatpush1.msra.mxu0 0.0
    %1884 = vmatprep.subr.mxu0 0.0
    %1885 = vmatpush1.msra.mxu0 0.0
    %1886 = vmatprep.subr.mxu0 0.0
    %1887 = vmatpush1.msra.mxu0 0.0
    %1888 = vmatprep.subr.mxu0 0.0
    %1889 = vmatpush1.msra.mxu0 0.0
    %1890 = vmatprep.subr.mxu0 0.0
    %1891 = vmatpush1.msra.mxu0 0.0
    %1892 = vmatprep.subr.mxu0 0.0
    %1893 = vmatpush1.msra.mxu0 0.0
    %1894 = vmatprep.subr.mxu0 0.0
    %1895 = vmatpush1.msra.mxu0 0.0
    %1896 = vmatprep.subr.mxu0 0.0
    %1897 = vmatpush1.msra.mxu0 0.0
    %1898 = vmatprep.subr.mxu0 0.0
    %1899 = vmatpush1.msra.mxu0 0.0
    %1900 = vmatprep.subr.mxu0 0.0
    %1901 = vmatpush1.msra.mxu0 0.0
    %1902 = vmatprep.subr.mxu0 0.0
    %1903 = vmatpush1.msra.mxu0 0.0
    %1904 = vmatprep.subr.mxu0 0.0
    %1905 = vmatpush1.msra.mxu0 0.0
    %1906 = vmatprep.subr.mxu0 0.0
    %1907 = vmatpush1.msra.mxu0 0.0
    %1908 = vmatprep.mubr.f32.mxu0 0.0
    %1909 = vmatmul.mubr.f32.gmra.mrb[0].mxu0 %v1842
    %v1910 = vpop.f32.mrb[0].mxu0
    %v1911 = vadd.f32 0.0, %v1910
    %v1912 = vpop.f32.mrb[0].mxu0
    %1913 = vdwg.mxu0
    %v1922 = vrot.slane %v1789, 7
    %v1923 = vsel %vm106, %v1922, %v1788
    %v1924 = vrot.slane %v1790, 6
    %v1925 = vsel %vm109, %v1924, %v1923
    %v1926 = vrot.slane %v1791, 5
    %v1927 = vsel %vm112, %v1926, %v1925
    %v1928 = vrot.slane %v1792, 4
    %v1929 = vsel %vm115, %v1928, %v1927
    %v1930 = vrot.slane %v1793, 3
    %v1931 = vsel %vm118, %v1930, %v1929
    %v1932 = vrot.slane %v1794, 2
    %v1933 = vsel %vm121, %v1932, %v1931
    %v1934 = vrot.slane %v1795, 1
    %v1935 = vsel %vm124, %v1934, %v1933
    %v1936 = vsel %vm127, %v1935, 0
    %1938 = vmatprep.subr.mxu0 0.0
    %1939 = vmatpush1.msra.mxu0 %v64
    %1940 = vmatprep.subr.mxu0 0.0
    %1941 = vmatpush1.msra.mxu0 %v65
    %1942 = vmatprep.subr.mxu0 0.0
    %1943 = vmatpush1.msra.mxu0 %v66
    %1944 = vmatprep.subr.mxu0 0.0
    %1945 = vmatpush1.msra.mxu0 %v67
    %1946 = vmatprep.subr.mxu0 0.0
    %1947 = vmatpush1.msra.mxu0 %v68
    %1948 = vmatprep.subr.mxu0 0.0
    %1949 = vmatpush1.msra.mxu0 %v69
    %1950 = vmatprep.subr.mxu0 0.0
    %1951 = vmatpush1.msra.mxu0 %v70
    %1952 = vmatprep.subr.mxu0 0.0
    %1953 = vmatpush1.msra.mxu0 %v71
    %1954 = vmatprep.subr.mxu0 0.0
    %1955 = vmatpush1.msra.mxu0 0.0
    %1956 = vmatprep.subr.mxu0 0.0
    %1957 = vmatpush1.msra.mxu0 0.0
    %1958 = vmatprep.subr.mxu0 0.0
    %1959 = vmatpush1.msra.mxu0 0.0
    %1960 = vmatprep.subr.mxu0 0.0
    %1961 = vmatpush1.msra.mxu0 0.0
    %1962 = vmatprep.subr.mxu0 0.0
    %1963 = vmatpush1.msra.mxu0 0.0
    %1964 = vmatprep.subr.mxu0 0.0
    %1965 = vmatpush1.msra.mxu0 0.0
    %1966 = vmatprep.subr.mxu0 0.0
    %1967 = vmatpush1.msra.mxu0 0.0
    %1968 = vmatprep.subr.mxu0 0.0
    %1969 = vmatpush1.msra.mxu0 0.0
    %1970 = vmatprep.subr.mxu0 0.0
    %1971 = vmatpush1.msra.mxu0 0.0
    %1972 = vmatprep.subr.mxu0 0.0
    %1973 = vmatpush1.msra.mxu0 0.0
    %1974 = vmatprep.subr.mxu0 0.0
    %1975 = vmatpush1.msra.mxu0 0.0
    %1976 = vmatprep.subr.mxu0 0.0
    %1977 = vmatpush1.msra.mxu0 0.0
    %1978 = vmatprep.subr.mxu0 0.0
    %1979 = vmatpush1.msra.mxu0 0.0
    %1980 = vmatprep.subr.mxu0 0.0
    %1981 = vmatpush1.msra.mxu0 0.0
    %1982 = vmatprep.subr.mxu0 0.0
    %1983 = vmatpush1.msra.mxu0 0.0
    %1984 = vmatprep.subr.mxu0 0.0
    %1985 = vmatpush1.msra.mxu0 0.0
    %1986 = vmatprep.subr.mxu0 0.0
    %1987 = vmatpush1.msra.mxu0 0.0
    %1988 = vmatprep.subr.mxu0 0.0
    %1989 = vmatpush1.msra.mxu0 0.0
    %1990 = vmatprep.subr.mxu0 0.0
    %1991 = vmatpush1.msra.mxu0 0.0
    %1992 = vmatprep.subr.mxu0 0.0
    %1993 = vmatpush1.msra.mxu0 0.0
    %1994 = vmatprep.subr.mxu0 0.0
    %1995 = vmatpush1.msra.mxu0 0.0
    %1996 = vmatprep.subr.mxu0 0.0
    %1997 = vmatpush1.msra.mxu0 0.0
    %1998 = vmatprep.subr.mxu0 0.0
    %1999 = vmatpush1.msra.mxu0 0.0
    %2000 = vmatprep.subr.mxu0 0.0
    %2001 = vmatpush1.msra.mxu0 0.0
    %2002 = vmatprep.mubr.f32.mxu0 0.0
    %2003 = vmatmul.mubr.f32.gmra.mrb[0].mxu0 %v1936
    %v2004 = vpop.f32.mrb[0].mxu0
    %v2005 = vadd.f32 %v1911, %v2004
    %v2006 = vpop.f32.mrb[0].mxu0
    %2007 = vdwg.mxu0
    %v2009 = vcombine.high %v2005, %v2005
    %v2011 = vunpack.c.l.s4 1966171168
    %v2012 = vunpack.c.0.s8 %v2011
    %v2013 = vlaneseq
    %v2014 = vshrl.u32 %v2013, 7
    %v2015 = vsub.s32 %v2012, %v2014
    %v2016 = vrot.slane %v2005, %v2015
    %v2018 = vunpack.c.l.s4 1966171168
    %v2019 = vunpack.c.0.s8 %v2018
    %v2020 = vlaneseq
    %v2021 = vshrl.u32 %v2020, 7
    %v2022 = vsub.s32 %v2019, %v2021
    %v2023 = vrot.slane %v2009, %v2022
    %v2024 = vcombine.high %v2016, %v2016
    %v2025 = vcombine.high %v2023, %v2023
    %v2027 = vunpack.c.l.s4 1966171168
    %v2028 = vunpack.c.0.s8 %v2027
    %v2029 = vlaneseq
    %v2030 = vshrl.u32 %v2029, 7
    %v2031 = vsub.s32 %v2028, %v2030
    %v2032 = vrot.slane %v2016, %v2031
    %v2034 = vunpack.c.l.s4 1966171168
    %v2035 = vunpack.c.0.s8 %v2034
    %v2036 = vlaneseq
    %v2037 = vshrl.u32 %v2036, 7
    %v2038 = vsub.s32 %v2035, %v2037
    %v2039 = vrot.slane %v2023, %v2038
    %v2041 = vunpack.c.l.s4 1966171168
    %v2042 = vunpack.c.0.s8 %v2041
    %v2043 = vlaneseq
    %v2044 = vshrl.u32 %v2043, 7
    %v2045 = vsub.s32 %v2042, %v2044
    %v2046 = vrot.slane %v2024, %v2045
    %v2048 = vunpack.c.l.s4 1966171168
    %v2049 = vunpack.c.0.s8 %v2048
    %v2050 = vlaneseq
    %v2051 = vshrl.u32 %v2050, 7
    %v2052 = vsub.s32 %v2049, %v2051
    %v2053 = vrot.slane %v2025, %v2052
    %v2054 = vcombine.high %v2032, %v2032
    %v2055 = vcombine.high %v2039, %v2039
    %v2056 = vcombine.high %v2046, %v2046
    %v2057 = vcombine.high %v2053, %v2053
    %2066 = vst.msk [vmem:[#allocation8 + $0x3] sm:$0x1] %vm589, %v2032
    %2067 = vst.msk [vmem:[#allocation8 + $0x7] sm:$0x1] %vm589, %v2046
    %2068 = vst.msk [vmem:[#allocation8 + $0xb] sm:$0x1] %vm589, %v2054
    %2069 = vst.msk [vmem:[#allocation8 + $0xf] sm:$0x1] %vm589, %v2056
    %2070 = vst.msk [vmem:[#allocation8 + $0x13] sm:$0x1] %vm589, %v2039
    %2071 = vst.msk [vmem:[#allocation8 + $0x17] sm:$0x1] %vm589, %v2053
    %2072 = vst.msk [vmem:[#allocation8 + $0x1b] sm:$0x1] %vm589, %v2055
    %2073 = vst.msk [vmem:[#allocation8 + $0x1f] sm:$0x1] %vm589, %v2057
    // Predicated region
    $region34: #{tpu_custom_call.1} parent=1 // pred_check
      _
    $region35: #{tpu_custom_call.1} parent=1 // pred_check_branch
      %2075 = sbr.rel (0) target = $region37
    $region36: #{tpu_custom_call.1} parent=1 // pred_region
      %s2077 = ssub.s32 512, 512
      %2078 = vsyncadd [#allocation4], %s2077
      %s2079 = sshll.u32 [#allocation8], 4
      %s2080 = int_to_ptr.vmem [resolvable:$true] %s2079
      %2085 = dma.vmem_to_hbm [thread:$0]  %s2080, 512, %s5, [#allocation4], 64, 64, 4
    $region37: #{tpu_custom_call.1} parent=1 // pred_fallthru
      _
    // Predicated region
    $region38: #{tpu_custom_call.1} parent=1 // pred_check
      _
    $region39: #{tpu_custom_call.1} parent=1 // pred_check_branch
      %2087 = sbr.rel (0) target = $region41
    $region40: #{tpu_custom_call.1} parent=1 // pred_region
      %2088 = dma.done [#allocation4], 512
    $region41: #{tpu_custom_call.1} parent=1 // pred_fallthru
      _
    %2089 = vsyncpa [#allocation3], 1
    %2090 = vsyncpa [#allocation6], 1
    %2091 = vsyncpa [#allocation4], 1

</llo_original>
